<compile_context>
chip_gen: v7x
topology: tpu7x:2x2x1
jax: 0.10.0
libtpu: 0.0.40
codegen_flags: <defaults>
</compile_context>

<pallas_src>
import functools

import jax
import jax.numpy as jnp
from jax.experimental import pallas as pl
from jax.experimental.pallas import tpu as pltpu


_VMEM = pl.BlockSpec(memory_space=pltpu.MemorySpace.VMEM)


def _softmax_rows(l):
    e = jnp.exp(l - jnp.max(l, axis=1, keepdims=True))
    return e / jnp.sum(e, axis=1, keepdims=True)


# ----------------------------------------------------------------------------
# Fused kernel: conv1 -> ELU -> conv2 -> ELU -> conv3 -> global_max_pool -> cascade
# ----------------------------------------------------------------------------
def _fused_hgat_kernel(x_ref, maskb_ref, poolb_ref,
                       waug1_ref, b1_ref, waug2_ref, b2_ref, waug3_ref, b3_ref,
                       wclsx_ref, bcls_ref, w2p_ref, w3p_ref,
                       out_ref, *, heads, hidden, c1, c2, c3):
    x = x_ref[...]                       # (N, F_in)
    mask_bias = maskb_ref[...]           # (N, N) additive: 0 where edge (dst,src), -1e30 else

    def gat_layer(x_in, waug_ref, b_ref, n_heads, f_out, apply_elu):
        hf = n_heads * f_out
        # One matmul produces features AND per-head attention scalars:
        #   haug = x @ [W | W@Asrc | W@Adst]  ->  (N, hf + 2*n_heads)
        haug = jnp.dot(x_in, waug_ref[...], preferred_element_type=jnp.float32)
        h = haug[:, :hf]                                        # (N, hf)
        a_src_t = jnp.transpose(haug[:, hf:hf + n_heads])       # (n_heads, N), single transpose
        a_dst = haug[:, hf + n_heads:hf + 2 * n_heads]          # (N, n_heads)

        outs = []
        for hd in range(n_heads):
            # e[i, j] = alpha_dst[i] + alpha_src[j]   (i = dst row, j = src col)
            e = a_dst[:, hd:hd + 1] + a_src_t[hd:hd + 1, :]     # (N, N)
            e = jnp.where(e > 0.0, e, 0.2 * e)                  # LeakyReLU(0.2)
            e = e + mask_bias                                   # additive mask (no selects)
            e = e - jnp.max(e, axis=1, keepdims=True)
            p = jnp.exp(e)                                      # masked entries underflow to 0
            p = p / jnp.sum(p, axis=1, keepdims=True)           # softmax over src per dst
            outs.append(jnp.dot(p, h[:, hd * f_out:(hd + 1) * f_out],
                                preferred_element_type=jnp.float32))  # (N, f_out)

        out = outs[0] if n_heads == 1 else jnp.concatenate(outs, axis=1)  # (N, hf)
        out = out + b_ref[...]
        if apply_elu:
            out = jnp.where(out > 0.0, out, jnp.exp(jnp.minimum(out, 0.0)) - 1.0)
        return out

    h1 = gat_layer(x, waug1_ref, b1_ref, heads, hidden // heads, True)
    # TODO(synk): dropout is identity (eval mode).
    h2 = gat_layer(h1, waug2_ref, b2_ref, heads, hidden // heads, True)
    h3 = gat_layer(h2, waug3_ref, b3_ref, 1, hidden, False)     # (N, hidden)

    # global_max_pool, vectorized over graphs: poolb is (B, N, 1) additive membership mask.
    pooled = jnp.max(h3[None, :, :] + poolb_ref[...], axis=1)   # (B, hidden)

    # Cascaded classifiers: x-projections of all 3 levels folded into one matmul.
    xw = jnp.dot(pooled, wclsx_ref[...],
                 preferred_element_type=jnp.float32) + bcls_ref[...]   # (B, c1+c2+c3)
    l1 = xw[:, :c1]
    p1 = _softmax_rows(l1)
    l2 = xw[:, c1:c1 + c2] + jnp.dot(p1, w2p_ref[...], preferred_element_type=jnp.float32)
    p2 = _softmax_rows(l2)
    l3 = xw[:, c1 + c2:] + jnp.dot(p2, w3p_ref[...], preferred_element_type=jnp.float32)

    out_ref[...] = jnp.concatenate([l1, l2, l3], axis=1)        # single (B, c1+c2+c3) store


# ----------------------------------------------------------------------------
# Wrapper
# ----------------------------------------------------------------------------
@functools.partial(jax.jit, static_argnames=("heads", "hidden"))
def hierarchical_gat_forward(x, mask, batch_onehot, params, *, heads, hidden):
    """x:(N,Fin)  mask:(N,N) with mask[dst,src]=1 (self-loops included)  batch_onehot:(B,N)."""
    B = batch_onehot.shape[0]
    NEG = jnp.float32(-1e30)

    # Additive masks built once in the wrapper.
    mask_bias = jnp.where(mask > 0, jnp.float32(0.0), NEG)                     # (N, N)
    pool_bias = jnp.where(batch_onehot > 0, jnp.float32(0.0), NEG)[:, :, None]  # (B, N, 1)

    def block_diag(att):  # (heads, f_out) -> (heads*f_out, heads) block-diagonal
        h, f = att.shape
        eye = jnp.eye(h, dtype=jnp.float32)
        return (eye[:, None, :] * att[:, :, None]).reshape(h * f, h)

    def fold(W, a_src, a_dst):  # fold attention projections into the feature matmul
        return jnp.concatenate([W, W @ block_diag(a_src), W @ block_diag(a_dst)], axis=1)

    waug1 = fold(params["w_c1"], params["asrc_c1"], params["adst_c1"])
    waug2 = fold(params["w_c2"], params["asrc_c2"], params["adst_c2"])
    waug3 = fold(params["w_c3"], params["asrc_c3"], params["adst_c3"])

    # Fold the three classifier x-projections into a single weight / bias.
    wclsx = jnp.concatenate([params["w_l1"], params["w_l2x"], params["w_l3x"]], axis=1)
    bcls = jnp.concatenate([params["b_l1"], params["b_l2"], params["b_l3"]]).reshape(1, -1)

    c1 = params["w_l1"].shape[1]
    c2 = params["w_l2x"].shape[1]
    c3 = params["w_l3x"].shape[1]

    kernel = functools.partial(_fused_hgat_kernel, heads=heads, hidden=hidden,
                               c1=c1, c2=c2, c3=c3)
    logits = pl.pallas_call(
        kernel,
        out_shape=jax.ShapeDtypeStruct((B, c1 + c2 + c3), jnp.float32),
        in_specs=[_VMEM] * 13,
        out_specs=_VMEM,
    )(x, mask_bias, pool_bias,
      waug1, params["b_c1"].reshape(1, -1),
      waug2, params["b_c2"].reshape(1, -1),
      waug3, params["b_c3"].reshape(1, -1),
      wclsx, bcls, params["w_l2p"], params["w_l3p"])

    return logits[:, :c1], logits[:, c1:c1 + c2], logits[:, c1 + c2:]


# ----------------------------------------------------------------------------
# Main
# ----------------------------------------------------------------------------
if __name__ == "__main__":
    key = jax.random.PRNGKey(0)

    # Small shapes consistent with the module (input_dim -> hidden -> 3-level heads).
    N = 16            # nodes (2 graphs of 8 nodes)
    B = 2             # graphs
    input_dim = 32
    hidden = 32
    heads = 4
    C1, C2, C3 = 4, 6, 8

    ks = jax.random.split(key, 16)

    def init(k, shape, fan_in):
        return jax.random.normal(k, shape, jnp.float32) / jnp.sqrt(jnp.float32(fan_in))

    params = {
        # conv1
        "w_c1": init(ks[0], (input_dim, hidden), input_dim),
        "asrc_c1": init(ks[1], (heads, hidden // heads), hidden // heads),
        "adst_c1": init(ks[2], (heads, hidden // heads), hidden // heads),
        "b_c1": jnp.zeros((hidden,), jnp.float32),
        # conv2
        "w_c2": init(ks[3], (hidden, hidden), hidden),
        "asrc_c2": init(ks[4], (heads, hidden // heads), hidden // heads),
        "adst_c2": init(ks[5], (heads, hidden // heads), hidden // heads),
        "b_c2": jnp.zeros((hidden,), jnp.float32),
        # conv3 (heads=1, out=hidden)
        "w_c3": init(ks[6], (hidden, hidden), hidden),
        "asrc_c3": init(ks[7], (1, hidden), hidden),
        "adst_c3": init(ks[8], (1, hidden), hidden),
        "b_c3": jnp.zeros((hidden,), jnp.float32),
        # classifiers (stored (in, out); concat folded into split weights)
        "w_l1": init(ks[9], (hidden, C1), hidden),
        "b_l1": jnp.zeros((C1,), jnp.float32),
        "w_l2x": init(ks[10], (hidden, C2), hidden + C1),
        "w_l2p": init(ks[11], (C1, C2), hidden + C1),
        "b_l2": jnp.zeros((C2,), jnp.float32),
        "w_l3x": init(ks[12], (hidden, C3), hidden + C2),
        "w_l3p": init(ks[13], (C2, C3), hidden + C2),
        "b_l3": jnp.zeros((C3,), jnp.float32),
    }

    # Node features.
    x = jax.random.normal(ks[14], (N, input_dim), jnp.float32)

    # Graph structure: two graphs of 8 nodes, bidirectional ring edges + self-loops.
    src, dst = [], []
    for g in range(B):
        base = g * (N // B)
        n = N // B
        for i in range(n):
            a, b = base + i, base + (i + 1) % n
            src += [a, b]
            dst += [b, a]
    mask = jnp.zeros((N, N), jnp.float32)
    mask = mask.at[jnp.array(dst), jnp.array(src)].set(1.0)   # mask[dst, src]
    mask = jnp.maximum(mask, jnp.eye(N, dtype=jnp.float32))   # add_self_loops=True

    # batch vector -> one-hot membership (B, N)
    batch = jnp.repeat(jnp.arange(B), N // B)
    batch_onehot = (batch[None, :] == jnp.arange(B)[:, None]).astype(jnp.float32)

    l1, l2, l3 = hierarchical_gat_forward(x, mask, batch_onehot, params,
                                          heads=heads, hidden=hidden)
    jax.block_until_ready((l1, l2, l3))
    assert l1.shape == (B, C1) and l2.shape == (B, C2) and l3.shape == (B, C3)
    print("KERNEL_OK")
</pallas_src>

<mosaic_0001>
module attributes {stable_mosaic.version = 11 : i64} {
  func.func @_fused_hgat_kernel(%arg0: memref<16x32xf32, #tpu.memory_space<vmem>>, %arg1: memref<16x16xf32, #tpu.memory_space<vmem>>, %arg2: memref<2x16x1xf32, #tpu.memory_space<vmem>>, %arg3: memref<32x40xf32, #tpu.memory_space<vmem>>, %arg4: memref<1x32xf32, #tpu.memory_space<vmem>>, %arg5: memref<32x40xf32, #tpu.memory_space<vmem>>, %arg6: memref<1x32xf32, #tpu.memory_space<vmem>>, %arg7: memref<32x34xf32, #tpu.memory_space<vmem>>, %arg8: memref<1x32xf32, #tpu.memory_space<vmem>>, %arg9: memref<32x18xf32, #tpu.memory_space<vmem>>, %arg10: memref<1x18xf32, #tpu.memory_space<vmem>>, %arg11: memref<4x6xf32, #tpu.memory_space<vmem>>, %arg12: memref<6x8xf32, #tpu.memory_space<vmem>>, %arg13: memref<2x18xf32, #tpu.memory_space<vmem>>) attributes {dimension_semantics = [], scalar_prefetch = 0 : i64, scratch_operands = 0 : i64, tpu.core_type = #tpu.core_type<tc>} {
    %c0 = arith.constant 0 : index
    %c0_0 = arith.constant 0 : index
    %0 = vector.load %arg0[%c0, %c0_0] : memref<16x32xf32, #tpu.memory_space<vmem>>, vector<16x32xf32>
    %c0_1 = arith.constant 0 : index
    %c0_2 = arith.constant 0 : index
    %1 = vector.load %arg1[%c0_1, %c0_2] : memref<16x16xf32, #tpu.memory_space<vmem>>, vector<16x16xf32>
    %c0_3 = arith.constant 0 : index
    %c0_4 = arith.constant 0 : index
    %2 = vector.load %arg3[%c0_3, %c0_4] : memref<32x40xf32, #tpu.memory_space<vmem>>, vector<32x40xf32>
    %cst = arith.constant dense<0.000000e+00> : vector<16x40xf32>
    %3 = tpu.matmul %0, %2, %cst {dimension_numbers = #tpu.dot_dimension_numbers<[1], [0], [0], [1], [0, 0, 1, 1], [], []>} : vector<16x32xf32>, vector<32x40xf32>, vector<16x40xf32> -> vector<16x40xf32>
    %4 = vector.extract_strided_slice %3 {offsets = [0, 0], sizes = [16, 32], strides = [1, 1]} : vector<16x40xf32> to vector<16x32xf32>
    %5 = vector.extract_strided_slice %3 {offsets = [0, 32], sizes = [16, 4], strides = [1, 1]} : vector<16x40xf32> to vector<16x4xf32>
    %6 = tpu.transpose %5, [1, 0] : vector<16x4xf32> -> vector<4x16xf32>
    %7 = vector.extract_strided_slice %3 {offsets = [0, 36], sizes = [16, 4], strides = [1, 1]} : vector<16x40xf32> to vector<16x4xf32>
    %8 = vector.extract_strided_slice %7 {offsets = [0, 0], sizes = [16, 1], strides = [1, 1]} : vector<16x4xf32> to vector<16x1xf32>
    %9 = vector.extract_strided_slice %6 {offsets = [0, 0], sizes = [1, 16], strides = [1, 1]} : vector<4x16xf32> to vector<1x16xf32>
    %10 = vector.broadcast %8 : vector<16x1xf32> to vector<16x16xf32>
    %11 = vector.broadcast %9 : vector<1x16xf32> to vector<16x16xf32>
    %12 = arith.addf %10, %11 : vector<16x16xf32>
    %cst_5 = arith.constant 0.000000e+00 : f32
    %13 = vector.broadcast %cst_5 : f32 to vector<16x16xf32>
    %14 = arith.cmpf ogt, %12, %13 : vector<16x16xf32>
    %cst_6 = arith.constant 2.000000e-01 : f32
    %15 = vector.broadcast %cst_6 : f32 to vector<16x16xf32>
    %16 = arith.mulf %15, %12 : vector<16x16xf32>
    %17 = arith.select %14, %12, %16 : vector<16x16xi1>, vector<16x16xf32>
    %18 = arith.addf %17, %1 : vector<16x16xf32>
    %cst_7 = arith.constant dense<0xFF800000> : vector<16xf32>
    %19 = vector.multi_reduction <maximumf>, %18, %cst_7 [1] : vector<16x16xf32> to vector<16xf32>
    %20 = vector.shape_cast %19 : vector<16xf32> to vector<16x1xf32>
    %21 = vector.broadcast %20 : vector<16x1xf32> to vector<16x16xf32>
    %22 = arith.subf %18, %21 : vector<16x16xf32>
    %23 = math.exp %22 : vector<16x16xf32>
    %cst_8 = arith.constant dense<0.000000e+00> : vector<16xf32>
    %24 = vector.multi_reduction <add>, %23, %cst_8 [1] : vector<16x16xf32> to vector<16xf32>
    %25 = vector.shape_cast %24 : vector<16xf32> to vector<16x1xf32>
    %26 = vector.broadcast %25 : vector<16x1xf32> to vector<16x16xf32>
    %27 = arith.divf %23, %26 : vector<16x16xf32>
    %28 = vector.extract_strided_slice %4 {offsets = [0, 0], sizes = [16, 8], strides = [1, 1]} : vector<16x32xf32> to vector<16x8xf32>
    %cst_9 = arith.constant dense<0.000000e+00> : vector<16x8xf32>
    %29 = tpu.matmul %27, %28, %cst_9 {dimension_numbers = #tpu.dot_dimension_numbers<[1], [0], [0], [1], [0, 0, 1, 1], [], []>} : vector<16x16xf32>, vector<16x8xf32>, vector<16x8xf32> -> vector<16x8xf32>
    %30 = vector.extract_strided_slice %7 {offsets = [0, 1], sizes = [16, 1], strides = [1, 1]} : vector<16x4xf32> to vector<16x1xf32>
    %31 = vector.extract_strided_slice %6 {offsets = [1, 0], sizes = [1, 16], strides = [1, 1]} : vector<4x16xf32> to vector<1x16xf32>
    %32 = vector.broadcast %30 : vector<16x1xf32> to vector<16x16xf32>
    %33 = vector.broadcast %31 : vector<1x16xf32> to vector<16x16xf32>
    %34 = arith.addf %32, %33 : vector<16x16xf32>
    %cst_10 = arith.constant 0.000000e+00 : f32
    %35 = vector.broadcast %cst_10 : f32 to vector<16x16xf32>
    %36 = arith.cmpf ogt, %34, %35 : vector<16x16xf32>
    %cst_11 = arith.constant 2.000000e-01 : f32
    %37 = vector.broadcast %cst_11 : f32 to vector<16x16xf32>
    %38 = arith.mulf %37, %34 : vector<16x16xf32>
    %39 = arith.select %36, %34, %38 : vector<16x16xi1>, vector<16x16xf32>
    %40 = arith.addf %39, %1 : vector<16x16xf32>
    %cst_12 = arith.constant dense<0xFF800000> : vector<16xf32>
    %41 = vector.multi_reduction <maximumf>, %40, %cst_12 [1] : vector<16x16xf32> to vector<16xf32>
    %42 = vector.shape_cast %41 : vector<16xf32> to vector<16x1xf32>
    %43 = vector.broadcast %42 : vector<16x1xf32> to vector<16x16xf32>
    %44 = arith.subf %40, %43 : vector<16x16xf32>
    %45 = math.exp %44 : vector<16x16xf32>
    %cst_13 = arith.constant dense<0.000000e+00> : vector<16xf32>
    %46 = vector.multi_reduction <add>, %45, %cst_13 [1] : vector<16x16xf32> to vector<16xf32>
    %47 = vector.shape_cast %46 : vector<16xf32> to vector<16x1xf32>
    %48 = vector.broadcast %47 : vector<16x1xf32> to vector<16x16xf32>
    %49 = arith.divf %45, %48 : vector<16x16xf32>
    %50 = vector.extract_strided_slice %4 {offsets = [0, 8], sizes = [16, 8], strides = [1, 1]} : vector<16x32xf32> to vector<16x8xf32>
    %cst_14 = arith.constant dense<0.000000e+00> : vector<16x8xf32>
    %51 = tpu.matmul %49, %50, %cst_14 {dimension_numbers = #tpu.dot_dimension_numbers<[1], [0], [0], [1], [0, 0, 1, 1], [], []>} : vector<16x16xf32>, vector<16x8xf32>, vector<16x8xf32> -> vector<16x8xf32>
    %52 = vector.extract_strided_slice %7 {offsets = [0, 2], sizes = [16, 1], strides = [1, 1]} : vector<16x4xf32> to vector<16x1xf32>
    %53 = vector.extract_strided_slice %6 {offsets = [2, 0], sizes = [1, 16], strides = [1, 1]} : vector<4x16xf32> to vector<1x16xf32>
    %54 = vector.broadcast %52 : vector<16x1xf32> to vector<16x16xf32>
    %55 = vector.broadcast %53 : vector<1x16xf32> to vector<16x16xf32>
    %56 = arith.addf %54, %55 : vector<16x16xf32>
    %cst_15 = arith.constant 0.000000e+00 : f32
    %57 = vector.broadcast %cst_15 : f32 to vector<16x16xf32>
    %58 = arith.cmpf ogt, %56, %57 : vector<16x16xf32>
    %cst_16 = arith.constant 2.000000e-01 : f32
    %59 = vector.broadcast %cst_16 : f32 to vector<16x16xf32>
    %60 = arith.mulf %59, %56 : vector<16x16xf32>
    %61 = arith.select %58, %56, %60 : vector<16x16xi1>, vector<16x16xf32>
    %62 = arith.addf %61, %1 : vector<16x16xf32>
    %cst_17 = arith.constant dense<0xFF800000> : vector<16xf32>
    %63 = vector.multi_reduction <maximumf>, %62, %cst_17 [1] : vector<16x16xf32> to vector<16xf32>
    %64 = vector.shape_cast %63 : vector<16xf32> to vector<16x1xf32>
    %65 = vector.broadcast %64 : vector<16x1xf32> to vector<16x16xf32>
    %66 = arith.subf %62, %65 : vector<16x16xf32>
    %67 = math.exp %66 : vector<16x16xf32>
    %cst_18 = arith.constant dense<0.000000e+00> : vector<16xf32>
    %68 = vector.multi_reduction <add>, %67, %cst_18 [1] : vector<16x16xf32> to vector<16xf32>
    %69 = vector.shape_cast %68 : vector<16xf32> to vector<16x1xf32>
    %70 = vector.broadcast %69 : vector<16x1xf32> to vector<16x16xf32>
    %71 = arith.divf %67, %70 : vector<16x16xf32>
    %72 = vector.extract_strided_slice %4 {offsets = [0, 16], sizes = [16, 8], strides = [1, 1]} : vector<16x32xf32> to vector<16x8xf32>
    %cst_19 = arith.constant dense<0.000000e+00> : vector<16x8xf32>
    %73 = tpu.matmul %71, %72, %cst_19 {dimension_numbers = #tpu.dot_dimension_numbers<[1], [0], [0], [1], [0, 0, 1, 1], [], []>} : vector<16x16xf32>, vector<16x8xf32>, vector<16x8xf32> -> vector<16x8xf32>
    %74 = vector.extract_strided_slice %7 {offsets = [0, 3], sizes = [16, 1], strides = [1, 1]} : vector<16x4xf32> to vector<16x1xf32>
    %75 = vector.extract_strided_slice %6 {offsets = [3, 0], sizes = [1, 16], strides = [1, 1]} : vector<4x16xf32> to vector<1x16xf32>
    %76 = vector.broadcast %74 : vector<16x1xf32> to vector<16x16xf32>
    %77 = vector.broadcast %75 : vector<1x16xf32> to vector<16x16xf32>
    %78 = arith.addf %76, %77 : vector<16x16xf32>
    %cst_20 = arith.constant 0.000000e+00 : f32
    %79 = vector.broadcast %cst_20 : f32 to vector<16x16xf32>
    %80 = arith.cmpf ogt, %78, %79 : vector<16x16xf32>
    %cst_21 = arith.constant 2.000000e-01 : f32
    %81 = vector.broadcast %cst_21 : f32 to vector<16x16xf32>
    %82 = arith.mulf %81, %78 : vector<16x16xf32>
    %83 = arith.select %80, %78, %82 : vector<16x16xi1>, vector<16x16xf32>
    %84 = arith.addf %83, %1 : vector<16x16xf32>
    %cst_22 = arith.constant dense<0xFF800000> : vector<16xf32>
    %85 = vector.multi_reduction <maximumf>, %84, %cst_22 [1] : vector<16x16xf32> to vector<16xf32>
    %86 = vector.shape_cast %85 : vector<16xf32> to vector<16x1xf32>
    %87 = vector.broadcast %86 : vector<16x1xf32> to vector<16x16xf32>
    %88 = arith.subf %84, %87 : vector<16x16xf32>
    %89 = math.exp %88 : vector<16x16xf32>
    %cst_23 = arith.constant dense<0.000000e+00> : vector<16xf32>
    %90 = vector.multi_reduction <add>, %89, %cst_23 [1] : vector<16x16xf32> to vector<16xf32>
    %91 = vector.shape_cast %90 : vector<16xf32> to vector<16x1xf32>
    %92 = vector.broadcast %91 : vector<16x1xf32> to vector<16x16xf32>
    %93 = arith.divf %89, %92 : vector<16x16xf32>
    %94 = vector.extract_strided_slice %4 {offsets = [0, 24], sizes = [16, 8], strides = [1, 1]} : vector<16x32xf32> to vector<16x8xf32>
    %cst_24 = arith.constant dense<0.000000e+00> : vector<16x8xf32>
    %95 = tpu.matmul %93, %94, %cst_24 {dimension_numbers = #tpu.dot_dimension_numbers<[1], [0], [0], [1], [0, 0, 1, 1], [], []>} : vector<16x16xf32>, vector<16x8xf32>, vector<16x8xf32> -> vector<16x8xf32>
    %96 = tpu.concatenate %29, %51, %73, %95 in 1 : vector<16x8xf32>, vector<16x8xf32>, vector<16x8xf32>, vector<16x8xf32> -> vector<16x32xf32>
    %c0_25 = arith.constant 0 : index
    %c0_26 = arith.constant 0 : index
    %97 = vector.load %arg4[%c0_25, %c0_26] : memref<1x32xf32, #tpu.memory_space<vmem>>, vector<1x32xf32>
    %98 = vector.broadcast %97 : vector<1x32xf32> to vector<16x32xf32>
    %99 = arith.addf %96, %98 : vector<16x32xf32>
    %cst_27 = arith.constant 0.000000e+00 : f32
    %100 = vector.broadcast %cst_27 : f32 to vector<16x32xf32>
    %101 = arith.cmpf ogt, %99, %100 : vector<16x32xf32>
    %cst_28 = arith.constant 0.000000e+00 : f32
    %102 = vector.broadcast %cst_28 : f32 to vector<16x32xf32>
    %103 = arith.minimumf %99, %102 : vector<16x32xf32>
    %104 = math.exp %103 : vector<16x32xf32>
    %cst_29 = arith.constant 1.000000e+00 : f32
    %105 = vector.broadcast %cst_29 : f32 to vector<16x32xf32>
    %106 = arith.subf %104, %105 : vector<16x32xf32>
    %107 = arith.select %101, %99, %106 : vector<16x32xi1>, vector<16x32xf32>
    %c0_30 = arith.constant 0 : index
    %c0_31 = arith.constant 0 : index
    %108 = vector.load %arg5[%c0_30, %c0_31] : memref<32x40xf32, #tpu.memory_space<vmem>>, vector<32x40xf32>
    %cst_32 = arith.constant dense<0.000000e+00> : vector<16x40xf32>
    %109 = tpu.matmul %107, %108, %cst_32 {dimension_numbers = #tpu.dot_dimension_numbers<[1], [0], [0], [1], [0, 0, 1, 1], [], []>} : vector<16x32xf32>, vector<32x40xf32>, vector<16x40xf32> -> vector<16x40xf32>
    %110 = vector.extract_strided_slice %109 {offsets = [0, 0], sizes = [16, 32], strides = [1, 1]} : vector<16x40xf32> to vector<16x32xf32>
    %111 = vector.extract_strided_slice %109 {offsets = [0, 32], sizes = [16, 4], strides = [1, 1]} : vector<16x40xf32> to vector<16x4xf32>
    %112 = tpu.transpose %111, [1, 0] : vector<16x4xf32> -> vector<4x16xf32>
    %113 = vector.extract_strided_slice %109 {offsets = [0, 36], sizes = [16, 4], strides = [1, 1]} : vector<16x40xf32> to vector<16x4xf32>
    %114 = vector.extract_strided_slice %113 {offsets = [0, 0], sizes = [16, 1], strides = [1, 1]} : vector<16x4xf32> to vector<16x1xf32>
    %115 = vector.extract_strided_slice %112 {offsets = [0, 0], sizes = [1, 16], strides = [1, 1]} : vector<4x16xf32> to vector<1x16xf32>
    %116 = vector.broadcast %114 : vector<16x1xf32> to vector<16x16xf32>
    %117 = vector.broadcast %115 : vector<1x16xf32> to vector<16x16xf32>
    %118 = arith.addf %116, %117 : vector<16x16xf32>
    %cst_33 = arith.constant 0.000000e+00 : f32
    %119 = vector.broadcast %cst_33 : f32 to vector<16x16xf32>
    %120 = arith.cmpf ogt, %118, %119 : vector<16x16xf32>
    %cst_34 = arith.constant 2.000000e-01 : f32
    %121 = vector.broadcast %cst_34 : f32 to vector<16x16xf32>
    %122 = arith.mulf %121, %118 : vector<16x16xf32>
    %123 = arith.select %120, %118, %122 : vector<16x16xi1>, vector<16x16xf32>
    %124 = arith.addf %123, %1 : vector<16x16xf32>
    %cst_35 = arith.constant dense<0xFF800000> : vector<16xf32>
    %125 = vector.multi_reduction <maximumf>, %124, %cst_35 [1] : vector<16x16xf32> to vector<16xf32>
    %126 = vector.shape_cast %125 : vector<16xf32> to vector<16x1xf32>
    %127 = vector.broadcast %126 : vector<16x1xf32> to vector<16x16xf32>
    %128 = arith.subf %124, %127 : vector<16x16xf32>
    %129 = math.exp %128 : vector<16x16xf32>
    %cst_36 = arith.constant dense<0.000000e+00> : vector<16xf32>
    %130 = vector.multi_reduction <add>, %129, %cst_36 [1] : vector<16x16xf32> to vector<16xf32>
    %131 = vector.shape_cast %130 : vector<16xf32> to vector<16x1xf32>
    %132 = vector.broadcast %131 : vector<16x1xf32> to vector<16x16xf32>
    %133 = arith.divf %129, %132 : vector<16x16xf32>
    %134 = vector.extract_strided_slice %110 {offsets = [0, 0], sizes = [16, 8], strides = [1, 1]} : vector<16x32xf32> to vector<16x8xf32>
    %cst_37 = arith.constant dense<0.000000e+00> : vector<16x8xf32>
    %135 = tpu.matmul %133, %134, %cst_37 {dimension_numbers = #tpu.dot_dimension_numbers<[1], [0], [0], [1], [0, 0, 1, 1], [], []>} : vector<16x16xf32>, vector<16x8xf32>, vector<16x8xf32> -> vector<16x8xf32>
    %136 = vector.extract_strided_slice %113 {offsets = [0, 1], sizes = [16, 1], strides = [1, 1]} : vector<16x4xf32> to vector<16x1xf32>
    %137 = vector.extract_strided_slice %112 {offsets = [1, 0], sizes = [1, 16], strides = [1, 1]} : vector<4x16xf32> to vector<1x16xf32>
    %138 = vector.broadcast %136 : vector<16x1xf32> to vector<16x16xf32>
    %139 = vector.broadcast %137 : vector<1x16xf32> to vector<16x16xf32>
    %140 = arith.addf %138, %139 : vector<16x16xf32>
    %cst_38 = arith.constant 0.000000e+00 : f32
    %141 = vector.broadcast %cst_38 : f32 to vector<16x16xf32>
    %142 = arith.cmpf ogt, %140, %141 : vector<16x16xf32>
    %cst_39 = arith.constant 2.000000e-01 : f32
    %143 = vector.broadcast %cst_39 : f32 to vector<16x16xf32>
    %144 = arith.mulf %143, %140 : vector<16x16xf32>
    %145 = arith.select %142, %140, %144 : vector<16x16xi1>, vector<16x16xf32>
    %146 = arith.addf %145, %1 : vector<16x16xf32>
    %cst_40 = arith.constant dense<0xFF800000> : vector<16xf32>
    %147 = vector.multi_reduction <maximumf>, %146, %cst_40 [1] : vector<16x16xf32> to vector<16xf32>
    %148 = vector.shape_cast %147 : vector<16xf32> to vector<16x1xf32>
    %149 = vector.broadcast %148 : vector<16x1xf32> to vector<16x16xf32>
    %150 = arith.subf %146, %149 : vector<16x16xf32>
    %151 = math.exp %150 : vector<16x16xf32>
    %cst_41 = arith.constant dense<0.000000e+00> : vector<16xf32>
    %152 = vector.multi_reduction <add>, %151, %cst_41 [1] : vector<16x16xf32> to vector<16xf32>
    %153 = vector.shape_cast %152 : vector<16xf32> to vector<16x1xf32>
    %154 = vector.broadcast %153 : vector<16x1xf32> to vector<16x16xf32>
    %155 = arith.divf %151, %154 : vector<16x16xf32>
    %156 = vector.extract_strided_slice %110 {offsets = [0, 8], sizes = [16, 8], strides = [1, 1]} : vector<16x32xf32> to vector<16x8xf32>
    %cst_42 = arith.constant dense<0.000000e+00> : vector<16x8xf32>
    %157 = tpu.matmul %155, %156, %cst_42 {dimension_numbers = #tpu.dot_dimension_numbers<[1], [0], [0], [1], [0, 0, 1, 1], [], []>} : vector<16x16xf32>, vector<16x8xf32>, vector<16x8xf32> -> vector<16x8xf32>
    %158 = vector.extract_strided_slice %113 {offsets = [0, 2], sizes = [16, 1], strides = [1, 1]} : vector<16x4xf32> to vector<16x1xf32>
    %159 = vector.extract_strided_slice %112 {offsets = [2, 0], sizes = [1, 16], strides = [1, 1]} : vector<4x16xf32> to vector<1x16xf32>
    %160 = vector.broadcast %158 : vector<16x1xf32> to vector<16x16xf32>
    %161 = vector.broadcast %159 : vector<1x16xf32> to vector<16x16xf32>
    %162 = arith.addf %160, %161 : vector<16x16xf32>
    %cst_43 = arith.constant 0.000000e+00 : f32
    %163 = vector.broadcast %cst_43 : f32 to vector<16x16xf32>
    %164 = arith.cmpf ogt, %162, %163 : vector<16x16xf32>
    %cst_44 = arith.constant 2.000000e-01 : f32
    %165 = vector.broadcast %cst_44 : f32 to vector<16x16xf32>
    %166 = arith.mulf %165, %162 : vector<16x16xf32>
    %167 = arith.select %164, %162, %166 : vector<16x16xi1>, vector<16x16xf32>
    %168 = arith.addf %167, %1 : vector<16x16xf32>
    %cst_45 = arith.constant dense<0xFF800000> : vector<16xf32>
    %169 = vector.multi_reduction <maximumf>, %168, %cst_45 [1] : vector<16x16xf32> to vector<16xf32>
    %170 = vector.shape_cast %169 : vector<16xf32> to vector<16x1xf32>
    %171 = vector.broadcast %170 : vector<16x1xf32> to vector<16x16xf32>
    %172 = arith.subf %168, %171 : vector<16x16xf32>
    %173 = math.exp %172 : vector<16x16xf32>
    %cst_46 = arith.constant dense<0.000000e+00> : vector<16xf32>
    %174 = vector.multi_reduction <add>, %173, %cst_46 [1] : vector<16x16xf32> to vector<16xf32>
    %175 = vector.shape_cast %174 : vector<16xf32> to vector<16x1xf32>
    %176 = vector.broadcast %175 : vector<16x1xf32> to vector<16x16xf32>
    %177 = arith.divf %173, %176 : vector<16x16xf32>
    %178 = vector.extract_strided_slice %110 {offsets = [0, 16], sizes = [16, 8], strides = [1, 1]} : vector<16x32xf32> to vector<16x8xf32>
    %cst_47 = arith.constant dense<0.000000e+00> : vector<16x8xf32>
    %179 = tpu.matmul %177, %178, %cst_47 {dimension_numbers = #tpu.dot_dimension_numbers<[1], [0], [0], [1], [0, 0, 1, 1], [], []>} : vector<16x16xf32>, vector<16x8xf32>, vector<16x8xf32> -> vector<16x8xf32>
    %180 = vector.extract_strided_slice %113 {offsets = [0, 3], sizes = [16, 1], strides = [1, 1]} : vector<16x4xf32> to vector<16x1xf32>
    %181 = vector.extract_strided_slice %112 {offsets = [3, 0], sizes = [1, 16], strides = [1, 1]} : vector<4x16xf32> to vector<1x16xf32>
    %182 = vector.broadcast %180 : vector<16x1xf32> to vector<16x16xf32>
    %183 = vector.broadcast %181 : vector<1x16xf32> to vector<16x16xf32>
    %184 = arith.addf %182, %183 : vector<16x16xf32>
    %cst_48 = arith.constant 0.000000e+00 : f32
    %185 = vector.broadcast %cst_48 : f32 to vector<16x16xf32>
    %186 = arith.cmpf ogt, %184, %185 : vector<16x16xf32>
    %cst_49 = arith.constant 2.000000e-01 : f32
    %187 = vector.broadcast %cst_49 : f32 to vector<16x16xf32>
    %188 = arith.mulf %187, %184 : vector<16x16xf32>
    %189 = arith.select %186, %184, %188 : vector<16x16xi1>, vector<16x16xf32>
    %190 = arith.addf %189, %1 : vector<16x16xf32>
    %cst_50 = arith.constant dense<0xFF800000> : vector<16xf32>
    %191 = vector.multi_reduction <maximumf>, %190, %cst_50 [1] : vector<16x16xf32> to vector<16xf32>
    %192 = vector.shape_cast %191 : vector<16xf32> to vector<16x1xf32>
    %193 = vector.broadcast %192 : vector<16x1xf32> to vector<16x16xf32>
    %194 = arith.subf %190, %193 : vector<16x16xf32>
    %195 = math.exp %194 : vector<16x16xf32>
    %cst_51 = arith.constant dense<0.000000e+00> : vector<16xf32>
    %196 = vector.multi_reduction <add>, %195, %cst_51 [1] : vector<16x16xf32> to vector<16xf32>
    %197 = vector.shape_cast %196 : vector<16xf32> to vector<16x1xf32>
    %198 = vector.broadcast %197 : vector<16x1xf32> to vector<16x16xf32>
    %199 = arith.divf %195, %198 : vector<16x16xf32>
    %200 = vector.extract_strided_slice %110 {offsets = [0, 24], sizes = [16, 8], strides = [1, 1]} : vector<16x32xf32> to vector<16x8xf32>
    %cst_52 = arith.constant dense<0.000000e+00> : vector<16x8xf32>
    %201 = tpu.matmul %199, %200, %cst_52 {dimension_numbers = #tpu.dot_dimension_numbers<[1], [0], [0], [1], [0, 0, 1, 1], [], []>} : vector<16x16xf32>, vector<16x8xf32>, vector<16x8xf32> -> vector<16x8xf32>
    %202 = tpu.concatenate %135, %157, %179, %201 in 1 : vector<16x8xf32>, vector<16x8xf32>, vector<16x8xf32>, vector<16x8xf32> -> vector<16x32xf32>
    %c0_53 = arith.constant 0 : index
    %c0_54 = arith.constant 0 : index
    %203 = vector.load %arg6[%c0_53, %c0_54] : memref<1x32xf32, #tpu.memory_space<vmem>>, vector<1x32xf32>
    %204 = vector.broadcast %203 : vector<1x32xf32> to vector<16x32xf32>
    %205 = arith.addf %202, %204 : vector<16x32xf32>
    %cst_55 = arith.constant 0.000000e+00 : f32
    %206 = vector.broadcast %cst_55 : f32 to vector<16x32xf32>
    %207 = arith.cmpf ogt, %205, %206 : vector<16x32xf32>
    %cst_56 = arith.constant 0.000000e+00 : f32
    %208 = vector.broadcast %cst_56 : f32 to vector<16x32xf32>
    %209 = arith.minimumf %205, %208 : vector<16x32xf32>
    %210 = math.exp %209 : vector<16x32xf32>
    %cst_57 = arith.constant 1.000000e+00 : f32
    %211 = vector.broadcast %cst_57 : f32 to vector<16x32xf32>
    %212 = arith.subf %210, %211 : vector<16x32xf32>
    %213 = arith.select %207, %205, %212 : vector<16x32xi1>, vector<16x32xf32>
    %c0_58 = arith.constant 0 : index
    %c0_59 = arith.constant 0 : index
    %214 = vector.load %arg7[%c0_58, %c0_59] : memref<32x34xf32, #tpu.memory_space<vmem>>, vector<32x34xf32>
    %cst_60 = arith.constant dense<0.000000e+00> : vector<16x34xf32>
    %215 = tpu.matmul %213, %214, %cst_60 {dimension_numbers = #tpu.dot_dimension_numbers<[1], [0], [0], [1], [0, 0, 1, 1], [], []>} : vector<16x32xf32>, vector<32x34xf32>, vector<16x34xf32> -> vector<16x34xf32>
    %216 = vector.extract_strided_slice %215 {offsets = [0, 0], sizes = [16, 32], strides = [1, 1]} : vector<16x34xf32> to vector<16x32xf32>
    %217 = vector.extract_strided_slice %215 {offsets = [0, 32], sizes = [16, 1], strides = [1, 1]} : vector<16x34xf32> to vector<16x1xf32>
    %218 = tpu.transpose %217, [1, 0] : vector<16x1xf32> -> vector<1x16xf32>
    %219 = vector.extract_strided_slice %215 {offsets = [0, 33], sizes = [16, 1], strides = [1, 1]} : vector<16x34xf32> to vector<16x1xf32>
    %220 = vector.broadcast %219 : vector<16x1xf32> to vector<16x16xf32>
    %221 = vector.broadcast %218 : vector<1x16xf32> to vector<16x16xf32>
    %222 = arith.addf %220, %221 : vector<16x16xf32>
    %cst_61 = arith.constant 0.000000e+00 : f32
    %223 = vector.broadcast %cst_61 : f32 to vector<16x16xf32>
    %224 = arith.cmpf ogt, %222, %223 : vector<16x16xf32>
    %cst_62 = arith.constant 2.000000e-01 : f32
    %225 = vector.broadcast %cst_62 : f32 to vector<16x16xf32>
    %226 = arith.mulf %225, %222 : vector<16x16xf32>
    %227 = arith.select %224, %222, %226 : vector<16x16xi1>, vector<16x16xf32>
    %228 = arith.addf %227, %1 : vector<16x16xf32>
    %cst_63 = arith.constant dense<0xFF800000> : vector<16xf32>
    %229 = vector.multi_reduction <maximumf>, %228, %cst_63 [1] : vector<16x16xf32> to vector<16xf32>
    %230 = vector.shape_cast %229 : vector<16xf32> to vector<16x1xf32>
    %231 = vector.broadcast %230 : vector<16x1xf32> to vector<16x16xf32>
    %232 = arith.subf %228, %231 : vector<16x16xf32>
    %233 = math.exp %232 : vector<16x16xf32>
    %cst_64 = arith.constant dense<0.000000e+00> : vector<16xf32>
    %234 = vector.multi_reduction <add>, %233, %cst_64 [1] : vector<16x16xf32> to vector<16xf32>
    %235 = vector.shape_cast %234 : vector<16xf32> to vector<16x1xf32>
    %236 = vector.broadcast %235 : vector<16x1xf32> to vector<16x16xf32>
    %237 = arith.divf %233, %236 : vector<16x16xf32>
    %cst_65 = arith.constant dense<0.000000e+00> : vector<16x32xf32>
    %238 = tpu.matmul %237, %216, %cst_65 {dimension_numbers = #tpu.dot_dimension_numbers<[1], [0], [0], [1], [0, 0, 1, 1], [], []>} : vector<16x16xf32>, vector<16x32xf32>, vector<16x32xf32> -> vector<16x32xf32>
    %c0_66 = arith.constant 0 : index
    %c0_67 = arith.constant 0 : index
    %239 = vector.load %arg8[%c0_66, %c0_67] : memref<1x32xf32, #tpu.memory_space<vmem>>, vector<1x32xf32>
    %240 = vector.broadcast %239 : vector<1x32xf32> to vector<16x32xf32>
    %241 = arith.addf %238, %240 : vector<16x32xf32>
    %242 = vector.shape_cast %241 : vector<16x32xf32> to vector<1x16x32xf32>
    %c0_68 = arith.constant 0 : index
    %c0_69 = arith.constant 0 : index
    %c0_70 = arith.constant 0 : index
    %243 = vector.load %arg2[%c0_68, %c0_69, %c0_70] : memref<2x16x1xf32, #tpu.memory_space<vmem>>, vector<2x16x1xf32>
    %244 = vector.broadcast %242 : vector<1x16x32xf32> to vector<2x16x32xf32>
    %245 = vector.broadcast %243 : vector<2x16x1xf32> to vector<2x16x32xf32>
    %246 = arith.addf %244, %245 : vector<2x16x32xf32>
    %cst_71 = arith.constant dense<0xFF800000> : vector<2x32xf32>
    %247 = vector.multi_reduction <maximumf>, %246, %cst_71 [1] : vector<2x16x32xf32> to vector<2x32xf32>
    %c0_72 = arith.constant 0 : index
    %c0_73 = arith.constant 0 : index
    %248 = vector.load %arg9[%c0_72, %c0_73] : memref<32x18xf32, #tpu.memory_space<vmem>>, vector<32x18xf32>
    %cst_74 = arith.constant dense<0.000000e+00> : vector<2x18xf32>
    %249 = tpu.matmul %247, %248, %cst_74 {dimension_numbers = #tpu.dot_dimension_numbers<[1], [0], [0], [1], [0, 0, 1, 1], [], []>} : vector<2x32xf32>, vector<32x18xf32>, vector<2x18xf32> -> vector<2x18xf32>
    %c0_75 = arith.constant 0 : index
    %c0_76 = arith.constant 0 : index
    %250 = vector.load %arg10[%c0_75, %c0_76] : memref<1x18xf32, #tpu.memory_space<vmem>>, vector<1x18xf32>
    %251 = vector.broadcast %250 : vector<1x18xf32> to vector<2x18xf32>
    %252 = arith.addf %249, %251 : vector<2x18xf32>
    %253 = vector.extract_strided_slice %252 {offsets = [0, 0], sizes = [2, 4], strides = [1, 1]} : vector<2x18xf32> to vector<2x4xf32>
    %cst_77 = arith.constant dense<0xFF800000> : vector<2xf32>
    %254 = vector.multi_reduction <maximumf>, %253, %cst_77 [1] : vector<2x4xf32> to vector<2xf32>
    %255 = vector.shape_cast %254 : vector<2xf32> to vector<2x1xf32>
    %256 = vector.broadcast %255 : vector<2x1xf32> to vector<2x4xf32>
    %257 = arith.subf %253, %256 : vector<2x4xf32>
    %258 = math.exp %257 : vector<2x4xf32>
    %cst_78 = arith.constant dense<0.000000e+00> : vector<2xf32>
    %259 = vector.multi_reduction <add>, %258, %cst_78 [1] : vector<2x4xf32> to vector<2xf32>
    %260 = vector.shape_cast %259 : vector<2xf32> to vector<2x1xf32>
    %261 = vector.broadcast %260 : vector<2x1xf32> to vector<2x4xf32>
    %262 = arith.divf %258, %261 : vector<2x4xf32>
    %263 = vector.extract_strided_slice %252 {offsets = [0, 4], sizes = [2, 6], strides = [1, 1]} : vector<2x18xf32> to vector<2x6xf32>
    %c0_79 = arith.constant 0 : index
    %c0_80 = arith.constant 0 : index
    %264 = vector.load %arg11[%c0_79, %c0_80] : memref<4x6xf32, #tpu.memory_space<vmem>>, vector<4x6xf32>
    %cst_81 = arith.constant dense<0.000000e+00> : vector<2x6xf32>
    %265 = tpu.matmul %262, %264, %cst_81 {dimension_numbers = #tpu.dot_dimension_numbers<[1], [0], [0], [1], [0, 0, 1, 1], [], []>} : vector<2x4xf32>, vector<4x6xf32>, vector<2x6xf32> -> vector<2x6xf32>
    %266 = arith.addf %263, %265 : vector<2x6xf32>
    %cst_82 = arith.constant dense<0xFF800000> : vector<2xf32>
    %267 = vector.multi_reduction <maximumf>, %266, %cst_82 [1] : vector<2x6xf32> to vector<2xf32>
    %268 = vector.shape_cast %267 : vector<2xf32> to vector<2x1xf32>
    %269 = vector.broadcast %268 : vector<2x1xf32> to vector<2x6xf32>
    %270 = arith.subf %266, %269 : vector<2x6xf32>
    %271 = math.exp %270 : vector<2x6xf32>
    %cst_83 = arith.constant dense<0.000000e+00> : vector<2xf32>
    %272 = vector.multi_reduction <add>, %271, %cst_83 [1] : vector<2x6xf32> to vector<2xf32>
    %273 = vector.shape_cast %272 : vector<2xf32> to vector<2x1xf32>
    %274 = vector.broadcast %273 : vector<2x1xf32> to vector<2x6xf32>
    %275 = arith.divf %271, %274 : vector<2x6xf32>
    %276 = vector.extract_strided_slice %252 {offsets = [0, 10], sizes = [2, 8], strides = [1, 1]} : vector<2x18xf32> to vector<2x8xf32>
    %c0_84 = arith.constant 0 : index
    %c0_85 = arith.constant 0 : index
    %277 = vector.load %arg12[%c0_84, %c0_85] : memref<6x8xf32, #tpu.memory_space<vmem>>, vector<6x8xf32>
    %cst_86 = arith.constant dense<0.000000e+00> : vector<2x8xf32>
    %278 = tpu.matmul %275, %277, %cst_86 {dimension_numbers = #tpu.dot_dimension_numbers<[1], [0], [0], [1], [0, 0, 1, 1], [], []>} : vector<2x6xf32>, vector<6x8xf32>, vector<2x8xf32> -> vector<2x8xf32>
    %279 = arith.addf %276, %278 : vector<2x8xf32>
    %280 = tpu.concatenate %253, %266, %279 in 1 : vector<2x4xf32>, vector<2x6xf32>, vector<2x8xf32> -> vector<2x18xf32>
    %c0_87 = arith.constant 0 : index
    %c0_88 = arith.constant 0 : index
    %281 = vector.load %arg13[%c0_87, %c0_88] : memref<2x18xf32, #tpu.memory_space<vmem>>, vector<2x18xf32>
    tpu.vector_store %arg13[%c0_87, %c0_88], %280 {strides = array<i32>} : memref<2x18xf32, #tpu.memory_space<vmem>>, vector<2x18xf32>,
    return
  }
}

</mosaic_0001>

<llo_original>
// kernel: hierarchical_gat_forward.1
$region0: #{hierarchical_gat_forward.1}
  #allocation0 [shape = 'u32[]', space=smem, size = 0x4, offset = 0x4, fixed_abs, tag = 'smem constant byte address 0x4 - core index']
  #allocation1 [shape = 'u32[144,128]{1,0:T(1,128)}', space=vmem, size = 0x12000, scoped, tag = 'internal scratch']
  %s0 = inlined_call_operand.vmem [shape: f32[16,32], index: 0, kind: input, shape index: {}]
  %s1 = inlined_call_operand.vmem [shape: f32[16,16], index: 1, kind: input, shape index: {}]
  %s2 = inlined_call_operand.vmem [shape: f32[2,16,1], index: 2, kind: input, shape index: {}]
  %s3 = inlined_call_operand.vmem [shape: f32[32,40], index: 3, kind: input, shape index: {}]
  %s4 = inlined_call_operand.vmem [shape: f32[1,32], index: 4, kind: input, shape index: {}]
  %s5 = inlined_call_operand.vmem [shape: f32[32,40], index: 5, kind: input, shape index: {}]
  %s6 = inlined_call_operand.vmem [shape: f32[1,32], index: 6, kind: input, shape index: {}]
  %s7 = inlined_call_operand.vmem [shape: f32[32,34], index: 7, kind: input, shape index: {}]
  %s8 = inlined_call_operand.vmem [shape: f32[1,32], index: 8, kind: input, shape index: {}]
  %s9 = inlined_call_operand.vmem [shape: f32[32,18], index: 9, kind: input, shape index: {}]
  %s10 = inlined_call_operand.vmem [shape: f32[1,18], index: 10, kind: input, shape index: {}]
  %s11 = inlined_call_operand.vmem [shape: f32[4,6], index: 11, kind: input, shape index: {}]
  %s12 = inlined_call_operand.vmem [shape: f32[6,8], index: 12, kind: input, shape index: {}]
  %s13 = inlined_call_operand.vmem [shape: f32[2,18], index: 13, kind: output, shape index: {}]
  %s14 = sld [smem:[#allocation0]]
  $region62: #{hierarchical_gat_forward.1} parent=0
    _
  %s16 = ssub.s32 1, %s14
  %s17 = scalar_select 0, %s16, %s14
  // Predicated region
  $region2: #{hierarchical_gat_forward.1} parent=0 // pred_check
    _
  $region3: #{hierarchical_gat_forward.1} parent=0 // pred_check_branch
    %19 = sbr.rel (0) target = $region5
  $region4: #{hierarchical_gat_forward.1} parent=0 // pred_region
    _
  $region5: #{hierarchical_gat_forward.1} parent=0 // pred_fallthru
    _
  // Predicated region
  $region6: #{hierarchical_gat_forward.1} parent=0 // pred_check
    _
  $region7: #{hierarchical_gat_forward.1} parent=0 // pred_check_branch
    %21 = sbr.rel (0) target = $region9
  $region8: #{hierarchical_gat_forward.1} parent=0 // pred_region
    _
  $region9: #{hierarchical_gat_forward.1} parent=0 // pred_fallthru
    _
  // Predicated region
  $region10: #{hierarchical_gat_forward.1} parent=0 // pred_check
    _
  $region11: #{hierarchical_gat_forward.1} parent=0 // pred_check_branch
    %23 = sbr.rel (0) target = $region13
  $region12: #{hierarchical_gat_forward.1} parent=0 // pred_region
    _
  $region13: #{hierarchical_gat_forward.1} parent=0 // pred_fallthru
    _
  // Predicated region
  $region14: #{hierarchical_gat_forward.1} parent=0 // pred_check
    _
  $region15: #{hierarchical_gat_forward.1} parent=0 // pred_check_branch
    %25 = sbr.rel (0) target = $region17
  $region16: #{hierarchical_gat_forward.1} parent=0 // pred_region
    _
  $region17: #{hierarchical_gat_forward.1} parent=0 // pred_fallthru
    _
  // Predicated region
  $region18: #{hierarchical_gat_forward.1} parent=0 // pred_check
    _
  $region19: #{hierarchical_gat_forward.1} parent=0 // pred_check_branch
    %27 = sbr.rel (0) target = $region21
  $region20: #{hierarchical_gat_forward.1} parent=0 // pred_region
    _
  $region21: #{hierarchical_gat_forward.1} parent=0 // pred_fallthru
    _
  // Predicated region
  $region22: #{hierarchical_gat_forward.1} parent=0 // pred_check
    _
  $region23: #{hierarchical_gat_forward.1} parent=0 // pred_check_branch
    %29 = sbr.rel (0) target = $region25
  $region24: #{hierarchical_gat_forward.1} parent=0 // pred_region
    _
  $region25: #{hierarchical_gat_forward.1} parent=0 // pred_fallthru
    _
  // Predicated region
  $region26: #{hierarchical_gat_forward.1} parent=0 // pred_check
    _
  $region27: #{hierarchical_gat_forward.1} parent=0 // pred_check_branch
    %31 = sbr.rel (0) target = $region29
  $region28: #{hierarchical_gat_forward.1} parent=0 // pred_region
    _
  $region29: #{hierarchical_gat_forward.1} parent=0 // pred_fallthru
    _
  // Predicated region
  $region30: #{hierarchical_gat_forward.1} parent=0 // pred_check
    _
  $region31: #{hierarchical_gat_forward.1} parent=0 // pred_check_branch
    %33 = sbr.rel (0) target = $region33
  $region32: #{hierarchical_gat_forward.1} parent=0 // pred_region
    _
  $region33: #{hierarchical_gat_forward.1} parent=0 // pred_fallthru
    _
  // Predicated region
  $region34: #{hierarchical_gat_forward.1} parent=0 // pred_check
    _
  $region35: #{hierarchical_gat_forward.1} parent=0 // pred_check_branch
    %35 = sbr.rel (0) target = $region37
  $region36: #{hierarchical_gat_forward.1} parent=0 // pred_region
    _
  $region37: #{hierarchical_gat_forward.1} parent=0 // pred_fallthru
    _
  // Predicated region
  $region38: #{hierarchical_gat_forward.1} parent=0 // pred_check
    _
  $region39: #{hierarchical_gat_forward.1} parent=0 // pred_check_branch
    %37 = sbr.rel (0) target = $region41
  $region40: #{hierarchical_gat_forward.1} parent=0 // pred_region
    _
  $region41: #{hierarchical_gat_forward.1} parent=0 // pred_fallthru
    _
  // Predicated region
  $region42: #{hierarchical_gat_forward.1} parent=0 // pred_check
    _
  $region43: #{hierarchical_gat_forward.1} parent=0 // pred_check_branch
    %39 = sbr.rel (0) target = $region45
  $region44: #{hierarchical_gat_forward.1} parent=0 // pred_region
    _
  $region45: #{hierarchical_gat_forward.1} parent=0 // pred_fallthru
    _
  // Predicated region
  $region46: #{hierarchical_gat_forward.1} parent=0 // pred_check
    _
  $region47: #{hierarchical_gat_forward.1} parent=0 // pred_check_branch
    %41 = sbr.rel (0) target = $region49
  $region48: #{hierarchical_gat_forward.1} parent=0 // pred_region
    _
  $region49: #{hierarchical_gat_forward.1} parent=0 // pred_fallthru
    _
  // Predicated region
  $region50: #{hierarchical_gat_forward.1} parent=0 // pred_check
    _
  $region51: #{hierarchical_gat_forward.1} parent=0 // pred_check_branch
    %43 = sbr.rel (0) target = $region53
  $region52: #{hierarchical_gat_forward.1} parent=0 // pred_region
    _
  $region53: #{hierarchical_gat_forward.1} parent=0 // pred_fallthru
    _
  %v44 = vld [vmem:[%s0] sm:$0xff]
  %v45 = vld [vmem:[%s0 + $0x8] sm:$0xff]
  %v46 = vld [vmem:[%s1] sm:$0xff]
  %v47 = vld [vmem:[%s1 + $0x8] sm:$0xff]
  %v48 = vld [vmem:[%s3] sm:$0xff]
  %v49 = vld [vmem:[%s3 + $0x8] sm:$0xff]
  %v50 = vld [vmem:[%s3 + $0x10] sm:$0xff]
  %v51 = vld [vmem:[%s3 + $0x18] sm:$0xff]
  %vm52 = vcmask 261120
  %v54 = vsel %vm52, %v44, 0
  %v57 = vsel %vm52, %v45, 0
  %59 = vmatprep.subr.mxu0 0.0
  %60 = vmatpush1.msra.mxu0 %v48
  %61 = vmatprep.subr.mxu0 0.0
  %62 = vmatpush1.msra.mxu0 %v49
  %63 = vmatprep.subr.mxu0 0.0
  %64 = vmatpush1.msra.mxu0 %v50
  %65 = vmatprep.subr.mxu0 0.0
  %66 = vmatpush1.msra.mxu0 %v51
  %67 = vmatprep.subr.mxu0 0.0
  %68 = vmatpush1.msra.mxu0 0.0
  %69 = vmatprep.subr.mxu0 0.0
  %70 = vmatpush1.msra.mxu0 0.0
  %71 = vmatprep.subr.mxu0 0.0
  %72 = vmatpush1.msra.mxu0 0.0
  %73 = vmatprep.subr.mxu0 0.0
  %74 = vmatpush1.msra.mxu0 0.0
  %75 = vmatprep.subr.mxu0 0.0
  %76 = vmatpush1.msra.mxu0 0.0
  %77 = vmatprep.subr.mxu0 0.0
  %78 = vmatpush1.msra.mxu0 0.0
  %79 = vmatprep.subr.mxu0 0.0
  %80 = vmatpush1.msra.mxu0 0.0
  %81 = vmatprep.subr.mxu0 0.0
  %82 = vmatpush1.msra.mxu0 0.0
  %83 = vmatprep.subr.mxu0 0.0
  %84 = vmatpush1.msra.mxu0 0.0
  %85 = vmatprep.subr.mxu0 0.0
  %86 = vmatpush1.msra.mxu0 0.0
  %87 = vmatprep.subr.mxu0 0.0
  %88 = vmatpush1.msra.mxu0 0.0
  %89 = vmatprep.subr.mxu0 0.0
  %90 = vmatpush1.msra.mxu0 0.0
  %91 = vmatprep.subr.mxu0 0.0
  %92 = vmatpush1.msra.mxu0 0.0
  %93 = vmatprep.subr.mxu0 0.0
  %94 = vmatpush1.msra.mxu0 0.0
  %95 = vmatprep.subr.mxu0 0.0
  %96 = vmatpush1.msra.mxu0 0.0
  %97 = vmatprep.subr.mxu0 0.0
  %98 = vmatpush1.msra.mxu0 0.0
  %99 = vmatprep.subr.mxu0 0.0
  %100 = vmatpush1.msra.mxu0 0.0
  %101 = vmatprep.subr.mxu0 0.0
  %102 = vmatpush1.msra.mxu0 0.0
  %103 = vmatprep.subr.mxu0 0.0
  %104 = vmatpush1.msra.mxu0 0.0
  %105 = vmatprep.subr.mxu0 0.0
  %106 = vmatpush1.msra.mxu0 0.0
  %107 = vmatprep.subr.mxu0 0.0
  %108 = vmatpush1.msra.mxu0 0.0
  %109 = vmatprep.subr.mxu0 0.0
  %110 = vmatpush1.msra.mxu0 0.0
  %111 = vmatprep.subr.mxu0 0.0
  %112 = vmatpush1.msra.mxu0 0.0
  %113 = vmatprep.subr.mxu0 0.0
  %114 = vmatpush1.msra.mxu0 0.0
  %115 = vmatprep.subr.mxu0 0.0
  %116 = vmatpush1.msra.mxu0 0.0
  %117 = vmatprep.subr.mxu0 0.0
  %118 = vmatpush1.msra.mxu0 0.0
  %119 = vmatprep.subr.mxu0 0.0
  %120 = vmatpush1.msra.mxu0 0.0
  %121 = vmatprep.subr.mxu0 0.0
  %122 = vmatpush1.msra.mxu0 0.0
  %123 = vmatprep.mubr.f32.mxu0 0.0
  %124 = vmatmul.mubr.f32.gmra.mrb[0].mxu0 %v54
  %v125 = vpop.f32.mrb[0].mxu0
  %v126 = vadd.f32 0.0, %v125
  %v127 = vpop.f32.mrb[0].mxu0
  %128 = vmatprep.mubr.f32.mxu0 0.0
  %129 = vmatmul.mubr.f32.gmra.mrb[0].mxu0 %v57
  %v130 = vpop.f32.mrb[0].mxu0
  %v131 = vadd.f32 0.0, %v130
  %v132 = vpop.f32.mrb[0].mxu0
  %133 = vdwg.mxu0
  %136 = vrot.lane.b32.xlu0 %v126, 96
  %v137 = vpop.permute.xlu0 %136
  %138 = vrot.lane.b32.xlu0 %v131, 96
  %v139 = vpop.permute.xlu0 %138
  %142 = vxpose.xlu0.b32.start [1/16] %v137, 128
  %143 = vxpose.xlu0.b32.cont [2/16] %v139, 128
  %144 = vxpose.xlu0.b32.cont [3/16] 0.0, 128
  %145 = vxpose.xlu0.b32.cont [4/16] 0.0, 128
  %146 = vxpose.xlu0.b32.cont [5/16] 0.0, 128
  %147 = vxpose.xlu0.b32.cont [6/16] 0.0, 128
  %148 = vxpose.xlu0.b32.cont [7/16] 0.0, 128
  %149 = vxpose.xlu0.b32.cont [8/16] 0.0, 128
  %150 = vxpose.xlu0.b32.cont [9/16] 0.0, 128
  %151 = vxpose.xlu0.b32.cont [10/16] 0.0, 128
  %152 = vxpose.xlu0.b32.cont [11/16] 0.0, 128
  %153 = vxpose.xlu0.b32.cont [12/16] 0.0, 128
  %154 = vxpose.xlu0.b32.cont [13/16] 0.0, 128
  %155 = vxpose.xlu0.b32.cont [14/16] 0.0, 128
  %156 = vxpose.xlu0.b32.cont [15/16] 0.0, 128
  %157 = vxpose.xlu0.b32.end [16/16] 0.0, 128
  %v158 = vpop.trf.xlu0
  %v159 = vpop.trf.xlu0
  %v160 = vpop.trf.xlu0
  %v161 = vpop.trf.xlu0
  %v162 = vpop.trf.xlu0
  %v163 = vpop.trf.xlu0
  %v164 = vpop.trf.xlu0
  %v165 = vpop.trf.xlu0
  %v166 = vpop.trf.xlu0
  %v167 = vpop.trf.xlu0
  %v168 = vpop.trf.xlu0
  %v169 = vpop.trf.xlu0
  %v170 = vpop.trf.xlu0
  %v171 = vpop.trf.xlu0
  %v172 = vpop.trf.xlu0
  %v173 = vpop.trf.xlu0
  %174 = vset.pattern.permute.xlu0 36
  %175 = vperm.xlu0 %174, %v126
  %v176 = vpop.permute.xlu0 %175
  %178 = vset.pattern.permute.xlu0 36
  %179 = vperm.xlu0 %178, %v131
  %v180 = vpop.permute.xlu0 %179
  %v182 = vlaneseq
  %v183 = vshrl.u32 %v182, 7
  %v184 = vsub.s32 0, %v183
  %v185 = vrot.slane %v158, %v184
  %v186 = vadd.f32 %v176, %v185
  %v187 = vadd.f32 %v180, %v185
  %vm188 = vcmp.gt.f32.partialorder %v186, 0.0
  %vm189 = vcmp.gt.f32.partialorder %v187, 0.0
  %v190 = vmul.f32 %v186, 0.2
  %v191 = vmul.f32 %v187, 0.2
  %v192 = vsel %vm188, %v186, %v190
  %v193 = vsel %vm189, %v187, %v191
  %v194 = vadd.f32 %v192, %v46
  %v195 = vadd.f32 %v193, %v47
  %vm196 = vcmask 130048
  %v197 = vsel %vm196, %v194, -inf
  %198 = vmax.xlane.f32.xlu0 %v197
  %v199 = vpop.xlane.xlu0 %198
  %v200 = vsel %vm196, %v195, -inf
  %201 = vmax.xlane.f32.xlu0 %v200
  %v202 = vpop.xlane.xlu0 %201
  %v203 = vsub.f32 %v194, %v199
  %v204 = vsub.f32 %v195, %v202
  %v205 = vmul.f32 %v203, 1.442695
  %v206 = vpow.pop %v205
  %v207 = vmul.f32 %v204, 1.442695
  %v208 = vpow.pop %v207
  %v209 = vsel %vm196, %v206, 0.0
  %210 = vadd.xlane.f32.xlu0 %v209
  %v211 = vpop.xlane.xlu0 %210
  %v212 = vsel %vm196, %v208, 0.0
  %213 = vadd.xlane.f32.xlu0 %v212
  %v214 = vpop.xlane.xlu0 %213
  %v215 = vrcp.pop %v211
  %v216 = vmul.f32 %v206, %v215
  %v217 = vrcp.pop %v214
  %v218 = vmul.f32 %v208, %v217
  %v220 = vsel %vm196, %v216, 0
  %v223 = vsel %vm196, %v218, 0
  %225 = vmatprep.subr.mxu0 0.0
  %226 = vmatpush1.msra.mxu0 %v126
  %227 = vmatprep.subr.mxu0 0.0
  %228 = vmatpush1.msra.mxu0 %v131
  %229 = vmatprep.subr.mxu0 0.0
  %230 = vmatpush1.msra.mxu0 0.0
  %231 = vmatprep.subr.mxu0 0.0
  %232 = vmatpush1.msra.mxu0 0.0
  %233 = vmatprep.subr.mxu0 0.0
  %234 = vmatpush1.msra.mxu0 0.0
  %235 = vmatprep.subr.mxu0 0.0
  %236 = vmatpush1.msra.mxu0 0.0
  %237 = vmatprep.subr.mxu0 0.0
  %238 = vmatpush1.msra.mxu0 0.0
  %239 = vmatprep.subr.mxu0 0.0
  %240 = vmatpush1.msra.mxu0 0.0
  %241 = vmatprep.subr.mxu0 0.0
  %242 = vmatpush1.msra.mxu0 0.0
  %243 = vmatprep.subr.mxu0 0.0
  %244 = vmatpush1.msra.mxu0 0.0
  %245 = vmatprep.subr.mxu0 0.0
  %246 = vmatpush1.msra.mxu0 0.0
  %247 = vmatprep.subr.mxu0 0.0
  %248 = vmatpush1.msra.mxu0 0.0
  %249 = vmatprep.subr.mxu0 0.0
  %250 = vmatpush1.msra.mxu0 0.0
  %251 = vmatprep.subr.mxu0 0.0
  %252 = vmatpush1.msra.mxu0 0.0
  %253 = vmatprep.subr.mxu0 0.0
  %254 = vmatpush1.msra.mxu0 0.0
  %255 = vmatprep.subr.mxu0 0.0
  %256 = vmatpush1.msra.mxu0 0.0
  %257 = vmatprep.subr.mxu0 0.0
  %258 = vmatpush1.msra.mxu0 0.0
  %259 = vmatprep.subr.mxu0 0.0
  %260 = vmatpush1.msra.mxu0 0.0
  %261 = vmatprep.subr.mxu0 0.0
  %262 = vmatpush1.msra.mxu0 0.0
  %263 = vmatprep.subr.mxu0 0.0
  %264 = vmatpush1.msra.mxu0 0.0
  %265 = vmatprep.subr.mxu0 0.0
  %266 = vmatpush1.msra.mxu0 0.0
  %267 = vmatprep.subr.mxu0 0.0
  %268 = vmatpush1.msra.mxu0 0.0
  %269 = vmatprep.subr.mxu0 0.0
  %270 = vmatpush1.msra.mxu0 0.0
  %271 = vmatprep.subr.mxu0 0.0
  %272 = vmatpush1.msra.mxu0 0.0
  %273 = vmatprep.subr.mxu0 0.0
  %274 = vmatpush1.msra.mxu0 0.0
  %275 = vmatprep.subr.mxu0 0.0
  %276 = vmatpush1.msra.mxu0 0.0
  %277 = vmatprep.subr.mxu0 0.0
  %278 = vmatpush1.msra.mxu0 0.0
  %279 = vmatprep.subr.mxu0 0.0
  %280 = vmatpush1.msra.mxu0 0.0
  %281 = vmatprep.subr.mxu0 0.0
  %282 = vmatpush1.msra.mxu0 0.0
  %283 = vmatprep.subr.mxu0 0.0
  %284 = vmatpush1.msra.mxu0 0.0
  %285 = vmatprep.subr.mxu0 0.0
  %286 = vmatpush1.msra.mxu0 0.0
  %287 = vmatprep.subr.mxu0 0.0
  %288 = vmatpush1.msra.mxu0 0.0
  %289 = vmatprep.mubr.f32.mxu0 0.0
  %290 = vmatmul.mubr.f32.gmra.mrb[0].mxu0 %v220
  %v291 = vpop.f32.mrb[0].mxu0
  %v292 = vadd.f32 0.0, %v291
  %v293 = vpop.f32.mrb[0].mxu0
  %294 = vmatprep.mubr.f32.mxu0 0.0
  %295 = vmatmul.mubr.f32.gmra.mrb[0].mxu0 %v223
  %v296 = vpop.f32.mrb[0].mxu0
  %v297 = vadd.f32 0.0, %v296
  %v298 = vpop.f32.mrb[0].mxu0
  %299 = vdwg.mxu0
  %300 = vset.pattern.permute.xlu0 37
  %301 = vperm.xlu0 %300, %v126
  %v302 = vpop.permute.xlu0 %301
  %304 = vset.pattern.permute.xlu0 37
  %305 = vperm.xlu0 %304, %v131
  %v306 = vpop.permute.xlu0 %305
  %v308 = vlaneseq
  %v309 = vshrl.u32 %v308, 7
  %v310 = vsub.s32 1, %v309
  %v311 = vrot.slane %v158, %v310
  %v312 = vadd.f32 %v302, %v311
  %v313 = vadd.f32 %v306, %v311
  %vm314 = vcmp.gt.f32.partialorder %v312, 0.0
  %vm315 = vcmp.gt.f32.partialorder %v313, 0.0
  %v316 = vmul.f32 %v312, 0.2
  %v317 = vmul.f32 %v313, 0.2
  %v318 = vsel %vm314, %v312, %v316
  %v319 = vsel %vm315, %v313, %v317
  %v320 = vadd.f32 %v318, %v46
  %v321 = vadd.f32 %v319, %v47
  %v322 = vsel %vm196, %v320, -inf
  %323 = vmax.xlane.f32.xlu0 %v322
  %v324 = vpop.xlane.xlu0 %323
  %v325 = vsel %vm196, %v321, -inf
  %326 = vmax.xlane.f32.xlu0 %v325
  %v327 = vpop.xlane.xlu0 %326
  %v328 = vsub.f32 %v320, %v324
  %v329 = vsub.f32 %v321, %v327
  %v330 = vmul.f32 %v328, 1.442695
  %v331 = vpow.pop %v330
  %v332 = vmul.f32 %v329, 1.442695
  %v333 = vpow.pop %v332
  %v334 = vsel %vm196, %v331, 0.0
  %335 = vadd.xlane.f32.xlu0 %v334
  %v336 = vpop.xlane.xlu0 %335
  %v337 = vsel %vm196, %v333, 0.0
  %338 = vadd.xlane.f32.xlu0 %v337
  %v339 = vpop.xlane.xlu0 %338
  %v340 = vrcp.pop %v336
  %v341 = vmul.f32 %v331, %v340
  %v342 = vrcp.pop %v339
  %v343 = vmul.f32 %v333, %v342
  %344 = vrot.lane.b32.xlu0 %v126, 120
  %v345 = vpop.permute.xlu0 %344
  %346 = vrot.lane.b32.xlu0 %v131, 120
  %v347 = vpop.permute.xlu0 %346
  %v351 = vsel %vm196, %v341, 0
  %v354 = vsel %vm196, %v343, 0
  %356 = vmatprep.subr.mxu0 0.0
  %357 = vmatpush1.msra.mxu0 %v345
  %358 = vmatprep.subr.mxu0 0.0
  %359 = vmatpush1.msra.mxu0 %v347
  %360 = vmatprep.subr.mxu0 0.0
  %361 = vmatpush1.msra.mxu0 0.0
  %362 = vmatprep.subr.mxu0 0.0
  %363 = vmatpush1.msra.mxu0 0.0
  %364 = vmatprep.subr.mxu0 0.0
  %365 = vmatpush1.msra.mxu0 0.0
  %366 = vmatprep.subr.mxu0 0.0
  %367 = vmatpush1.msra.mxu0 0.0
  %368 = vmatprep.subr.mxu0 0.0
  %369 = vmatpush1.msra.mxu0 0.0
  %370 = vmatprep.subr.mxu0 0.0
  %371 = vmatpush1.msra.mxu0 0.0
  %372 = vmatprep.subr.mxu0 0.0
  %373 = vmatpush1.msra.mxu0 0.0
  %374 = vmatprep.subr.mxu0 0.0
  %375 = vmatpush1.msra.mxu0 0.0
  %376 = vmatprep.subr.mxu0 0.0
  %377 = vmatpush1.msra.mxu0 0.0
  %378 = vmatprep.subr.mxu0 0.0
  %379 = vmatpush1.msra.mxu0 0.0
  %380 = vmatprep.subr.mxu0 0.0
  %381 = vmatpush1.msra.mxu0 0.0
  %382 = vmatprep.subr.mxu0 0.0
  %383 = vmatpush1.msra.mxu0 0.0
  %384 = vmatprep.subr.mxu0 0.0
  %385 = vmatpush1.msra.mxu0 0.0
  %386 = vmatprep.subr.mxu0 0.0
  %387 = vmatpush1.msra.mxu0 0.0
  %388 = vmatprep.subr.mxu0 0.0
  %389 = vmatpush1.msra.mxu0 0.0
  %390 = vmatprep.subr.mxu0 0.0
  %391 = vmatpush1.msra.mxu0 0.0
  %392 = vmatprep.subr.mxu0 0.0
  %393 = vmatpush1.msra.mxu0 0.0
  %394 = vmatprep.subr.mxu0 0.0
  %395 = vmatpush1.msra.mxu0 0.0
  %396 = vmatprep.subr.mxu0 0.0
  %397 = vmatpush1.msra.mxu0 0.0
  %398 = vmatprep.subr.mxu0 0.0
  %399 = vmatpush1.msra.mxu0 0.0
  %400 = vmatprep.subr.mxu0 0.0
  %401 = vmatpush1.msra.mxu0 0.0
  %402 = vmatprep.subr.mxu0 0.0
  %403 = vmatpush1.msra.mxu0 0.0
  %404 = vmatprep.subr.mxu0 0.0
  %405 = vmatpush1.msra.mxu0 0.0
  %406 = vmatprep.subr.mxu0 0.0
  %407 = vmatpush1.msra.mxu0 0.0
  %408 = vmatprep.subr.mxu0 0.0
  %409 = vmatpush1.msra.mxu0 0.0
  %410 = vmatprep.subr.mxu0 0.0
  %411 = vmatpush1.msra.mxu0 0.0
  %412 = vmatprep.subr.mxu0 0.0
  %413 = vmatpush1.msra.mxu0 0.0
  %414 = vmatprep.subr.mxu0 0.0
  %415 = vmatpush1.msra.mxu0 0.0
  %416 = vmatprep.subr.mxu0 0.0
  %417 = vmatpush1.msra.mxu0 0.0
  %418 = vmatprep.subr.mxu0 0.0
  %419 = vmatpush1.msra.mxu0 0.0
  %420 = vmatprep.mubr.f32.mxu0 0.0
  %421 = vmatmul.mubr.f32.gmra.mrb[0].mxu0 %v351
  %v422 = vpop.f32.mrb[0].mxu0
  %v423 = vadd.f32 0.0, %v422
  %v424 = vpop.f32.mrb[0].mxu0
  %425 = vmatprep.mubr.f32.mxu0 0.0
  %426 = vmatmul.mubr.f32.gmra.mrb[0].mxu0 %v354
  %v427 = vpop.f32.mrb[0].mxu0
  %v428 = vadd.f32 0.0, %v427
  %v429 = vpop.f32.mrb[0].mxu0
  %430 = vdwg.mxu0
  %431 = vset.pattern.permute.xlu0 38
  %432 = vperm.xlu0 %431, %v126
  %v433 = vpop.permute.xlu0 %432
  %435 = vset.pattern.permute.xlu0 38
  %436 = vperm.xlu0 %435, %v131
  %v437 = vpop.permute.xlu0 %436
  %v439 = vlaneseq
  %v440 = vshrl.u32 %v439, 7
  %v441 = vsub.s32 2, %v440
  %v442 = vrot.slane %v158, %v441
  %v443 = vadd.f32 %v433, %v442
  %v444 = vadd.f32 %v437, %v442
  %vm445 = vcmp.gt.f32.partialorder %v443, 0.0
  %vm446 = vcmp.gt.f32.partialorder %v444, 0.0
  %v447 = vmul.f32 %v443, 0.2
  %v448 = vmul.f32 %v444, 0.2
  %v449 = vsel %vm445, %v443, %v447
  %v450 = vsel %vm446, %v444, %v448
  %v451 = vadd.f32 %v449, %v46
  %v452 = vadd.f32 %v450, %v47
  %v453 = vsel %vm196, %v451, -inf
  %454 = vmax.xlane.f32.xlu0 %v453
  %v455 = vpop.xlane.xlu0 %454
  %v456 = vsel %vm196, %v452, -inf
  %457 = vmax.xlane.f32.xlu0 %v456
  %v458 = vpop.xlane.xlu0 %457
  %v459 = vsub.f32 %v451, %v455
  %v460 = vsub.f32 %v452, %v458
  %v461 = vmul.f32 %v459, 1.442695
  %v462 = vpow.pop %v461
  %v463 = vmul.f32 %v460, 1.442695
  %v464 = vpow.pop %v463
  %v465 = vsel %vm196, %v462, 0.0
  %466 = vadd.xlane.f32.xlu0 %v465
  %v467 = vpop.xlane.xlu0 %466
  %v468 = vsel %vm196, %v464, 0.0
  %469 = vadd.xlane.f32.xlu0 %v468
  %v470 = vpop.xlane.xlu0 %469
  %v471 = vrcp.pop %v467
  %v472 = vmul.f32 %v462, %v471
  %v473 = vrcp.pop %v470
  %v474 = vmul.f32 %v464, %v473
  %475 = vrot.lane.b32.xlu0 %v126, 112
  %v476 = vpop.permute.xlu0 %475
  %477 = vrot.lane.b32.xlu0 %v131, 112
  %v478 = vpop.permute.xlu0 %477
  %v482 = vsel %vm196, %v472, 0
  %v485 = vsel %vm196, %v474, 0
  %487 = vmatprep.subr.mxu0 0.0
  %488 = vmatpush1.msra.mxu0 %v476
  %489 = vmatprep.subr.mxu0 0.0
  %490 = vmatpush1.msra.mxu0 %v478
  %491 = vmatprep.subr.mxu0 0.0
  %492 = vmatpush1.msra.mxu0 0.0
  %493 = vmatprep.subr.mxu0 0.0
  %494 = vmatpush1.msra.mxu0 0.0
  %495 = vmatprep.subr.mxu0 0.0
  %496 = vmatpush1.msra.mxu0 0.0
  %497 = vmatprep.subr.mxu0 0.0
  %498 = vmatpush1.msra.mxu0 0.0
  %499 = vmatprep.subr.mxu0 0.0
  %500 = vmatpush1.msra.mxu0 0.0
  %501 = vmatprep.subr.mxu0 0.0
  %502 = vmatpush1.msra.mxu0 0.0
  %503 = vmatprep.subr.mxu0 0.0
  %504 = vmatpush1.msra.mxu0 0.0
  %505 = vmatprep.subr.mxu0 0.0
  %506 = vmatpush1.msra.mxu0 0.0
  %507 = vmatprep.subr.mxu0 0.0
  %508 = vmatpush1.msra.mxu0 0.0
  %509 = vmatprep.subr.mxu0 0.0
  %510 = vmatpush1.msra.mxu0 0.0
  %511 = vmatprep.subr.mxu0 0.0
  %512 = vmatpush1.msra.mxu0 0.0
  %513 = vmatprep.subr.mxu0 0.0
  %514 = vmatpush1.msra.mxu0 0.0
  %515 = vmatprep.subr.mxu0 0.0
  %516 = vmatpush1.msra.mxu0 0.0
  %517 = vmatprep.subr.mxu0 0.0
  %518 = vmatpush1.msra.mxu0 0.0
  %519 = vmatprep.subr.mxu0 0.0
  %520 = vmatpush1.msra.mxu0 0.0
  %521 = vmatprep.subr.mxu0 0.0
  %522 = vmatpush1.msra.mxu0 0.0
  %523 = vmatprep.subr.mxu0 0.0
  %524 = vmatpush1.msra.mxu0 0.0
  %525 = vmatprep.subr.mxu0 0.0
  %526 = vmatpush1.msra.mxu0 0.0
  %527 = vmatprep.subr.mxu0 0.0
  %528 = vmatpush1.msra.mxu0 0.0
  %529 = vmatprep.subr.mxu0 0.0
  %530 = vmatpush1.msra.mxu0 0.0
  %531 = vmatprep.subr.mxu0 0.0
  %532 = vmatpush1.msra.mxu0 0.0
  %533 = vmatprep.subr.mxu0 0.0
  %534 = vmatpush1.msra.mxu0 0.0
  %535 = vmatprep.subr.mxu0 0.0
  %536 = vmatpush1.msra.mxu0 0.0
  %537 = vmatprep.subr.mxu0 0.0
  %538 = vmatpush1.msra.mxu0 0.0
  %539 = vmatprep.subr.mxu0 0.0
  %540 = vmatpush1.msra.mxu0 0.0
  %541 = vmatprep.subr.mxu0 0.0
  %542 = vmatpush1.msra.mxu0 0.0
  %543 = vmatprep.subr.mxu0 0.0
  %544 = vmatpush1.msra.mxu0 0.0
  %545 = vmatprep.subr.mxu0 0.0
  %546 = vmatpush1.msra.mxu0 0.0
  %547 = vmatprep.subr.mxu0 0.0
  %548 = vmatpush1.msra.mxu0 0.0
  %549 = vmatprep.subr.mxu0 0.0
  %550 = vmatpush1.msra.mxu0 0.0
  %551 = vmatprep.mubr.f32.mxu0 0.0
  %552 = vmatmul.mubr.f32.gmra.mrb[0].mxu0 %v482
  %v553 = vpop.f32.mrb[0].mxu0
  %v554 = vadd.f32 0.0, %v553
  %v555 = vpop.f32.mrb[0].mxu0
  %556 = vmatprep.mubr.f32.mxu0 0.0
  %557 = vmatmul.mubr.f32.gmra.mrb[0].mxu0 %v485
  %v558 = vpop.f32.mrb[0].mxu0
  %v559 = vadd.f32 0.0, %v558
  %v560 = vpop.f32.mrb[0].mxu0
  %561 = vdwg.mxu0
  %562 = vset.pattern.permute.xlu0 39
  %563 = vperm.xlu0 %562, %v126
  %v564 = vpop.permute.xlu0 %563
  %566 = vset.pattern.permute.xlu0 39
  %567 = vperm.xlu0 %566, %v131
  %v568 = vpop.permute.xlu0 %567
  %v570 = vlaneseq
  %v571 = vshrl.u32 %v570, 7
  %v572 = vsub.s32 3, %v571
  %v573 = vrot.slane %v158, %v572
  %v574 = vadd.f32 %v564, %v573
  %v575 = vadd.f32 %v568, %v573
  %vm576 = vcmp.gt.f32.partialorder %v574, 0.0
  %vm577 = vcmp.gt.f32.partialorder %v575, 0.0
  %v578 = vmul.f32 %v574, 0.2
  %v579 = vmul.f32 %v575, 0.2
  %v580 = vsel %vm576, %v574, %v578
  %v581 = vsel %vm577, %v575, %v579
  %v582 = vadd.f32 %v580, %v46
  %v583 = vadd.f32 %v581, %v47
  %v584 = vsel %vm196, %v582, -inf
  %585 = vmax.xlane.f32.xlu0 %v584
  %v586 = vpop.xlane.xlu0 %585
  %v587 = vsel %vm196, %v583, -inf
  %588 = vmax.xlane.f32.xlu0 %v587
  %v589 = vpop.xlane.xlu0 %588
  %v590 = vsub.f32 %v582, %v586
  %v591 = vsub.f32 %v583, %v589
  %v592 = vmul.f32 %v590, 1.442695
  %v593 = vpow.pop %v592
  %v594 = vmul.f32 %v591, 1.442695
  %v595 = vpow.pop %v594
  %v596 = vsel %vm196, %v593, 0.0
  %597 = vadd.xlane.f32.xlu0 %v596
  %v598 = vpop.xlane.xlu0 %597
  %v599 = vsel %vm196, %v595, 0.0
  %600 = vadd.xlane.f32.xlu0 %v599
  %v601 = vpop.xlane.xlu0 %600
  %v602 = vrcp.pop %v598
  %v603 = vmul.f32 %v593, %v602
  %v604 = vrcp.pop %v601
  %v605 = vmul.f32 %v595, %v604
  %606 = vrot.lane.b32.xlu0 %v126, 104
  %v607 = vpop.permute.xlu0 %606
  %608 = vrot.lane.b32.xlu0 %v131, 104
  %v609 = vpop.permute.xlu0 %608
  %v613 = vsel %vm196, %v603, 0
  %v616 = vsel %vm196, %v605, 0
  %618 = vmatprep.subr.mxu0 0.0
  %619 = vmatpush1.msra.mxu0 %v607
  %620 = vmatprep.subr.mxu0 0.0
  %621 = vmatpush1.msra.mxu0 %v609
  %622 = vmatprep.subr.mxu0 0.0
  %623 = vmatpush1.msra.mxu0 0.0
  %624 = vmatprep.subr.mxu0 0.0
  %625 = vmatpush1.msra.mxu0 0.0
  %626 = vmatprep.subr.mxu0 0.0
  %627 = vmatpush1.msra.mxu0 0.0
  %628 = vmatprep.subr.mxu0 0.0
  %629 = vmatpush1.msra.mxu0 0.0
  %630 = vmatprep.subr.mxu0 0.0
  %631 = vmatpush1.msra.mxu0 0.0
  %632 = vmatprep.subr.mxu0 0.0
  %633 = vmatpush1.msra.mxu0 0.0
  %634 = vmatprep.subr.mxu0 0.0
  %635 = vmatpush1.msra.mxu0 0.0
  %636 = vmatprep.subr.mxu0 0.0
  %637 = vmatpush1.msra.mxu0 0.0
  %638 = vmatprep.subr.mxu0 0.0
  %639 = vmatpush1.msra.mxu0 0.0
  %640 = vmatprep.subr.mxu0 0.0
  %641 = vmatpush1.msra.mxu0 0.0
  %642 = vmatprep.subr.mxu0 0.0
  %643 = vmatpush1.msra.mxu0 0.0
  %644 = vmatprep.subr.mxu0 0.0
  %645 = vmatpush1.msra.mxu0 0.0
  %646 = vmatprep.subr.mxu0 0.0
  %647 = vmatpush1.msra.mxu0 0.0
  %648 = vmatprep.subr.mxu0 0.0
  %649 = vmatpush1.msra.mxu0 0.0
  %650 = vmatprep.subr.mxu0 0.0
  %651 = vmatpush1.msra.mxu0 0.0
  %652 = vmatprep.subr.mxu0 0.0
  %653 = vmatpush1.msra.mxu0 0.0
  %654 = vmatprep.subr.mxu0 0.0
  %655 = vmatpush1.msra.mxu0 0.0
  %656 = vmatprep.subr.mxu0 0.0
  %657 = vmatpush1.msra.mxu0 0.0
  %658 = vmatprep.subr.mxu0 0.0
  %659 = vmatpush1.msra.mxu0 0.0
  %660 = vmatprep.subr.mxu0 0.0
  %661 = vmatpush1.msra.mxu0 0.0
  %662 = vmatprep.subr.mxu0 0.0
  %663 = vmatpush1.msra.mxu0 0.0
  %664 = vmatprep.subr.mxu0 0.0
  %665 = vmatpush1.msra.mxu0 0.0
  %666 = vmatprep.subr.mxu0 0.0
  %667 = vmatpush1.msra.mxu0 0.0
  %668 = vmatprep.subr.mxu0 0.0
  %669 = vmatpush1.msra.mxu0 0.0
  %670 = vmatprep.subr.mxu0 0.0
  %671 = vmatpush1.msra.mxu0 0.0
  %672 = vmatprep.subr.mxu0 0.0
  %673 = vmatpush1.msra.mxu0 0.0
  %674 = vmatprep.subr.mxu0 0.0
  %675 = vmatpush1.msra.mxu0 0.0
  %676 = vmatprep.subr.mxu0 0.0
  %677 = vmatpush1.msra.mxu0 0.0
  %678 = vmatprep.subr.mxu0 0.0
  %679 = vmatpush1.msra.mxu0 0.0
  %680 = vmatprep.subr.mxu0 0.0
  %681 = vmatpush1.msra.mxu0 0.0
  %682 = vmatprep.mubr.f32.mxu0 0.0
  %683 = vmatmul.mubr.f32.gmra.mrb[0].mxu0 %v613
  %v684 = vpop.f32.mrb[0].mxu0
  %v685 = vadd.f32 0.0, %v684
  %v686 = vpop.f32.mrb[0].mxu0
  %687 = vmatprep.mubr.f32.mxu0 0.0
  %688 = vmatmul.mubr.f32.gmra.mrb[0].mxu0 %v616
  %v689 = vpop.f32.mrb[0].mxu0
  %v690 = vadd.f32 0.0, %v689
  %v691 = vpop.f32.mrb[0].mxu0
  %692 = vdwg.mxu0
  %695 = vrot.lane.b32.xlu0 %v423, 8
  %v696 = vpop.permute.xlu0 %695
  %697 = vrot.lane.b32.xlu0 %v428, 8
  %v698 = vpop.permute.xlu0 %697
  %703 = vrot.lane.b32.xlu0 %v554, 16
  %v704 = vpop.permute.xlu0 %703
  %705 = vrot.lane.b32.xlu0 %v559, 16
  %v706 = vpop.permute.xlu0 %705
  %711 = vrot.lane.b32.xlu0 %v685, 24
  %v712 = vpop.permute.xlu0 %711
  %713 = vrot.lane.b32.xlu0 %v690, 24
  %v714 = vpop.permute.xlu0 %713
  %vm717 = vcmask 64512
  %v718 = vsel %vm717, %v292, %v696
  %v719 = vsel %vm717, %v297, %v698
  %v720 = vsel %vm196, %v718, %v704
  %v721 = vsel %vm196, %v719, %v706
  %vm722 = vcmask 195584
  %v723 = vsel %vm722, %v720, %v712
  %v724 = vsel %vm722, %v721, %v714
  %v725 = vld [vmem:[%s4] sm:$0x1]
  %v727 = vlaneseq
  %v728 = vshrl.u32 %v727, 7
  %v729 = vsub.s32 0, %v728
  %v730 = vrot.slane %v725, %v729
  %v732 = vadd.f32 %v723, %v730
  %v733 = vadd.f32 %v724, %v730
  %vm734 = vcmp.gt.f32.partialorder %v732, 0.0
  %vm735 = vcmp.gt.f32.partialorder %v733, 0.0
  %v736 = vmin.f32 %v732, 0.0
  %v737 = vmin.f32 %v733, 0.0
  %v738 = vmul.f32 %v736, 1.442695
  %v739 = vpow.pop %v738
  %v740 = vmul.f32 %v737, 1.442695
  %v741 = vpow.pop %v740
  %v742 = vsub.f32 %v739, 1.0
  %v743 = vsub.f32 %v741, 1.0
  %v744 = vsel %vm734, %v732, %v742
  %v745 = vsel %vm735, %v733, %v743
  %v746 = vld [vmem:[%s5] sm:$0xff]
  %v747 = vld [vmem:[%s5 + $0x8] sm:$0xff]
  %v748 = vld [vmem:[%s5 + $0x10] sm:$0xff]
  %v749 = vld [vmem:[%s5 + $0x18] sm:$0xff]
  %v751 = vsel %vm52, %v744, 0
  %v754 = vsel %vm52, %v745, 0
  %756 = vmatprep.subr.mxu0 0.0
  %757 = vmatpush1.msra.mxu0 %v746
  %758 = vmatprep.subr.mxu0 0.0
  %759 = vmatpush1.msra.mxu0 %v747
  %760 = vmatprep.subr.mxu0 0.0
  %761 = vmatpush1.msra.mxu0 %v748
  %762 = vmatprep.subr.mxu0 0.0
  %763 = vmatpush1.msra.mxu0 %v749
  %764 = vmatprep.subr.mxu0 0.0
  %765 = vmatpush1.msra.mxu0 0.0
  %766 = vmatprep.subr.mxu0 0.0
  %767 = vmatpush1.msra.mxu0 0.0
  %768 = vmatprep.subr.mxu0 0.0
  %769 = vmatpush1.msra.mxu0 0.0
  %770 = vmatprep.subr.mxu0 0.0
  %771 = vmatpush1.msra.mxu0 0.0
  %772 = vmatprep.subr.mxu0 0.0
  %773 = vmatpush1.msra.mxu0 0.0
  %774 = vmatprep.subr.mxu0 0.0
  %775 = vmatpush1.msra.mxu0 0.0
  %776 = vmatprep.subr.mxu0 0.0
  %777 = vmatpush1.msra.mxu0 0.0
  %778 = vmatprep.subr.mxu0 0.0
  %779 = vmatpush1.msra.mxu0 0.0
  %780 = vmatprep.subr.mxu0 0.0
  %781 = vmatpush1.msra.mxu0 0.0
  %782 = vmatprep.subr.mxu0 0.0
  %783 = vmatpush1.msra.mxu0 0.0
  %784 = vmatprep.subr.mxu0 0.0
  %785 = vmatpush1.msra.mxu0 0.0
  %786 = vmatprep.subr.mxu0 0.0
  %787 = vmatpush1.msra.mxu0 0.0
  %788 = vmatprep.subr.mxu0 0.0
  %789 = vmatpush1.msra.mxu0 0.0
  %790 = vmatprep.subr.mxu0 0.0
  %791 = vmatpush1.msra.mxu0 0.0
  %792 = vmatprep.subr.mxu0 0.0
  %793 = vmatpush1.msra.mxu0 0.0
  %794 = vmatprep.subr.mxu0 0.0
  %795 = vmatpush1.msra.mxu0 0.0
  %796 = vmatprep.subr.mxu0 0.0
  %797 = vmatpush1.msra.mxu0 0.0
  %798 = vmatprep.subr.mxu0 0.0
  %799 = vmatpush1.msra.mxu0 0.0
  %800 = vmatprep.subr.mxu0 0.0
  %801 = vmatpush1.msra.mxu0 0.0
  %802 = vmatprep.subr.mxu0 0.0
  %803 = vmatpush1.msra.mxu0 0.0
  %804 = vmatprep.subr.mxu0 0.0
  %805 = vmatpush1.msra.mxu0 0.0
  %806 = vmatprep.subr.mxu0 0.0
  %807 = vmatpush1.msra.mxu0 0.0
  %808 = vmatprep.subr.mxu0 0.0
  %809 = vmatpush1.msra.mxu0 0.0
  %810 = vmatprep.subr.mxu0 0.0
  %811 = vmatpush1.msra.mxu0 0.0
  %812 = vmatprep.subr.mxu0 0.0
  %813 = vmatpush1.msra.mxu0 0.0
  %814 = vmatprep.subr.mxu0 0.0
  %815 = vmatpush1.msra.mxu0 0.0
  %816 = vmatprep.subr.mxu0 0.0
  %817 = vmatpush1.msra.mxu0 0.0
  %818 = vmatprep.subr.mxu0 0.0
  %819 = vmatpush1.msra.mxu0 0.0
  %820 = vmatprep.mubr.f32.mxu0 0.0
  %821 = vmatmul.mubr.f32.gmra.mrb[0].mxu0 %v751
  %v822 = vpop.f32.mrb[0].mxu0
  %v823 = vadd.f32 0.0, %v822
  %v824 = vpop.f32.mrb[0].mxu0
  %825 = vmatprep.mubr.f32.mxu0 0.0
  %826 = vmatmul.mubr.f32.gmra.mrb[0].mxu0 %v754
  %v827 = vpop.f32.mrb[0].mxu0
  %v828 = vadd.f32 0.0, %v827
  %v829 = vpop.f32.mrb[0].mxu0
  %830 = vdwg.mxu0
  %833 = vrot.lane.b32.xlu0 %v823, 96
  %v834 = vpop.permute.xlu0 %833
  %835 = vrot.lane.b32.xlu0 %v828, 96
  %v836 = vpop.permute.xlu0 %835
  %839 = vxpose.xlu0.b32.start [1/16] %v834, 128
  %840 = vxpose.xlu0.b32.cont [2/16] %v836, 128
  %841 = vxpose.xlu0.b32.cont [3/16] 0.0, 128
  %842 = vxpose.xlu0.b32.cont [4/16] 0.0, 128
  %843 = vxpose.xlu0.b32.cont [5/16] 0.0, 128
  %844 = vxpose.xlu0.b32.cont [6/16] 0.0, 128
  %845 = vxpose.xlu0.b32.cont [7/16] 0.0, 128
  %846 = vxpose.xlu0.b32.cont [8/16] 0.0, 128
  %847 = vxpose.xlu0.b32.cont [9/16] 0.0, 128
  %848 = vxpose.xlu0.b32.cont [10/16] 0.0, 128
  %849 = vxpose.xlu0.b32.cont [11/16] 0.0, 128
  %850 = vxpose.xlu0.b32.cont [12/16] 0.0, 128
  %851 = vxpose.xlu0.b32.cont [13/16] 0.0, 128
  %852 = vxpose.xlu0.b32.cont [14/16] 0.0, 128
  %853 = vxpose.xlu0.b32.cont [15/16] 0.0, 128
  %854 = vxpose.xlu0.b32.end [16/16] 0.0, 128
  %v855 = vpop.trf.xlu0
  %v856 = vpop.trf.xlu0
  %v857 = vpop.trf.xlu0
  %v858 = vpop.trf.xlu0
  %v859 = vpop.trf.xlu0
  %v860 = vpop.trf.xlu0
  %v861 = vpop.trf.xlu0
  %v862 = vpop.trf.xlu0
  %v863 = vpop.trf.xlu0
  %v864 = vpop.trf.xlu0
  %v865 = vpop.trf.xlu0
  %v866 = vpop.trf.xlu0
  %v867 = vpop.trf.xlu0
  %v868 = vpop.trf.xlu0
  %v869 = vpop.trf.xlu0
  %v870 = vpop.trf.xlu0
  %871 = vset.pattern.permute.xlu0 36
  %872 = vperm.xlu0 %871, %v823
  %v873 = vpop.permute.xlu0 %872
  %875 = vset.pattern.permute.xlu0 36
  %876 = vperm.xlu0 %875, %v828
  %v877 = vpop.permute.xlu0 %876
  %v879 = vlaneseq
  %v880 = vshrl.u32 %v879, 7
  %v881 = vsub.s32 0, %v880
  %v882 = vrot.slane %v855, %v881
  %v883 = vadd.f32 %v873, %v882
  %v884 = vadd.f32 %v877, %v882
  %vm885 = vcmp.gt.f32.partialorder %v883, 0.0
  %vm886 = vcmp.gt.f32.partialorder %v884, 0.0
  %v887 = vmul.f32 %v883, 0.2
  %v888 = vmul.f32 %v884, 0.2
  %v889 = vsel %vm885, %v883, %v887
  %v890 = vsel %vm886, %v884, %v888
  %v891 = vadd.f32 %v889, %v46
  %v892 = vadd.f32 %v890, %v47
  %v893 = vsel %vm196, %v891, -inf
  %894 = vmax.xlane.f32.xlu0 %v893
  %v895 = vpop.xlane.xlu0 %894
  %v896 = vsel %vm196, %v892, -inf
  %897 = vmax.xlane.f32.xlu0 %v896
  %v898 = vpop.xlane.xlu0 %897
  %v899 = vsub.f32 %v891, %v895
  %v900 = vsub.f32 %v892, %v898
  %v901 = vmul.f32 %v899, 1.442695
  %v902 = vpow.pop %v901
  %v903 = vmul.f32 %v900, 1.442695
  %v904 = vpow.pop %v903
  %v905 = vsel %vm196, %v902, 0.0
  %906 = vadd.xlane.f32.xlu0 %v905
  %v907 = vpop.xlane.xlu0 %906
  %v908 = vsel %vm196, %v904, 0.0
  %909 = vadd.xlane.f32.xlu0 %v908
  %v910 = vpop.xlane.xlu0 %909
  %v911 = vrcp.pop %v907
  %v912 = vmul.f32 %v902, %v911
  %v913 = vrcp.pop %v910
  %v914 = vmul.f32 %v904, %v913
  %v916 = vsel %vm196, %v912, 0
  %v919 = vsel %vm196, %v914, 0
  %921 = vmatprep.subr.mxu0 0.0
  %922 = vmatpush1.msra.mxu0 %v823
  %923 = vmatprep.subr.mxu0 0.0
  %924 = vmatpush1.msra.mxu0 %v828
  %925 = vmatprep.subr.mxu0 0.0
  %926 = vmatpush1.msra.mxu0 0.0
  %927 = vmatprep.subr.mxu0 0.0
  %928 = vmatpush1.msra.mxu0 0.0
  %929 = vmatprep.subr.mxu0 0.0
  %930 = vmatpush1.msra.mxu0 0.0
  %931 = vmatprep.subr.mxu0 0.0
  %932 = vmatpush1.msra.mxu0 0.0
  %933 = vmatprep.subr.mxu0 0.0
  %934 = vmatpush1.msra.mxu0 0.0
  %935 = vmatprep.subr.mxu0 0.0
  %936 = vmatpush1.msra.mxu0 0.0
  %937 = vmatprep.subr.mxu0 0.0
  %938 = vmatpush1.msra.mxu0 0.0
  %939 = vmatprep.subr.mxu0 0.0
  %940 = vmatpush1.msra.mxu0 0.0
  %941 = vmatprep.subr.mxu0 0.0
  %942 = vmatpush1.msra.mxu0 0.0
  %943 = vmatprep.subr.mxu0 0.0
  %944 = vmatpush1.msra.mxu0 0.0
  %945 = vmatprep.subr.mxu0 0.0
  %946 = vmatpush1.msra.mxu0 0.0
  %947 = vmatprep.subr.mxu0 0.0
  %948 = vmatpush1.msra.mxu0 0.0
  %949 = vmatprep.subr.mxu0 0.0
  %950 = vmatpush1.msra.mxu0 0.0
  %951 = vmatprep.subr.mxu0 0.0
  %952 = vmatpush1.msra.mxu0 0.0
  %953 = vmatprep.subr.mxu0 0.0
  %954 = vmatpush1.msra.mxu0 0.0
  %955 = vmatprep.subr.mxu0 0.0
  %956 = vmatpush1.msra.mxu0 0.0
  %957 = vmatprep.subr.mxu0 0.0
  %958 = vmatpush1.msra.mxu0 0.0
  %959 = vmatprep.subr.mxu0 0.0
  %960 = vmatpush1.msra.mxu0 0.0
  %961 = vmatprep.subr.mxu0 0.0
  %962 = vmatpush1.msra.mxu0 0.0
  %963 = vmatprep.subr.mxu0 0.0
  %964 = vmatpush1.msra.mxu0 0.0
  %965 = vmatprep.subr.mxu0 0.0
  %966 = vmatpush1.msra.mxu0 0.0
  %967 = vmatprep.subr.mxu0 0.0
  %968 = vmatpush1.msra.mxu0 0.0
  %969 = vmatprep.subr.mxu0 0.0
  %970 = vmatpush1.msra.mxu0 0.0
  %971 = vmatprep.subr.mxu0 0.0
  %972 = vmatpush1.msra.mxu0 0.0
  %973 = vmatprep.subr.mxu0 0.0
  %974 = vmatpush1.msra.mxu0 0.0
  %975 = vmatprep.subr.mxu0 0.0
  %976 = vmatpush1.msra.mxu0 0.0
  %977 = vmatprep.subr.mxu0 0.0
  %978 = vmatpush1.msra.mxu0 0.0
  %979 = vmatprep.subr.mxu0 0.0
  %980 = vmatpush1.msra.mxu0 0.0
  %981 = vmatprep.subr.mxu0 0.0
  %982 = vmatpush1.msra.mxu0 0.0
  %983 = vmatprep.subr.mxu0 0.0
  %984 = vmatpush1.msra.mxu0 0.0
  %985 = vmatprep.mubr.f32.mxu0 0.0
  %986 = vmatmul.mubr.f32.gmra.mrb[0].mxu0 %v916
  %v987 = vpop.f32.mrb[0].mxu0
  %v988 = vadd.f32 0.0, %v987
  %v989 = vpop.f32.mrb[0].mxu0
  %990 = vmatprep.mubr.f32.mxu0 0.0
  %991 = vmatmul.mubr.f32.gmra.mrb[0].mxu0 %v919
  %v992 = vpop.f32.mrb[0].mxu0
  %v993 = vadd.f32 0.0, %v992
  %v994 = vpop.f32.mrb[0].mxu0
  %995 = vdwg.mxu0
  %996 = vset.pattern.permute.xlu0 37
  %997 = vperm.xlu0 %996, %v823
  %v998 = vpop.permute.xlu0 %997
  %1000 = vset.pattern.permute.xlu0 37
  %1001 = vperm.xlu0 %1000, %v828
  %v1002 = vpop.permute.xlu0 %1001
  %v1004 = vlaneseq
  %v1005 = vshrl.u32 %v1004, 7
  %v1006 = vsub.s32 1, %v1005
  %v1007 = vrot.slane %v855, %v1006
  %v1008 = vadd.f32 %v998, %v1007
  %v1009 = vadd.f32 %v1002, %v1007
  %vm1010 = vcmp.gt.f32.partialorder %v1008, 0.0
  %vm1011 = vcmp.gt.f32.partialorder %v1009, 0.0
  %v1012 = vmul.f32 %v1008, 0.2
  %v1013 = vmul.f32 %v1009, 0.2
  %v1014 = vsel %vm1010, %v1008, %v1012
  %v1015 = vsel %vm1011, %v1009, %v1013
  %v1016 = vadd.f32 %v1014, %v46
  %v1017 = vadd.f32 %v1015, %v47
  %v1018 = vsel %vm196, %v1016, -inf
  %1019 = vmax.xlane.f32.xlu0 %v1018
  %v1020 = vpop.xlane.xlu0 %1019
  %v1021 = vsel %vm196, %v1017, -inf
  %1022 = vmax.xlane.f32.xlu0 %v1021
  %v1023 = vpop.xlane.xlu0 %1022
  %v1024 = vsub.f32 %v1016, %v1020
  %v1025 = vsub.f32 %v1017, %v1023
  %v1026 = vmul.f32 %v1024, 1.442695
  %v1027 = vpow.pop %v1026
  %v1028 = vmul.f32 %v1025, 1.442695
  %v1029 = vpow.pop %v1028
  %v1030 = vsel %vm196, %v1027, 0.0
  %1031 = vadd.xlane.f32.xlu0 %v1030
  %v1032 = vpop.xlane.xlu0 %1031
  %v1033 = vsel %vm196, %v1029, 0.0
  %1034 = vadd.xlane.f32.xlu0 %v1033
  %v1035 = vpop.xlane.xlu0 %1034
  %v1036 = vrcp.pop %v1032
  %v1037 = vmul.f32 %v1027, %v1036
  %v1038 = vrcp.pop %v1035
  %v1039 = vmul.f32 %v1029, %v1038
  %1040 = vrot.lane.b32.xlu0 %v823, 120
  %v1041 = vpop.permute.xlu0 %1040
  %1042 = vrot.lane.b32.xlu0 %v828, 120
  %v1043 = vpop.permute.xlu0 %1042
  %v1047 = vsel %vm196, %v1037, 0
  %v1050 = vsel %vm196, %v1039, 0
  %1052 = vmatprep.subr.mxu0 0.0
  %1053 = vmatpush1.msra.mxu0 %v1041
  %1054 = vmatprep.subr.mxu0 0.0
  %1055 = vmatpush1.msra.mxu0 %v1043
  %1056 = vmatprep.subr.mxu0 0.0
  %1057 = vmatpush1.msra.mxu0 0.0
  %1058 = vmatprep.subr.mxu0 0.0
  %1059 = vmatpush1.msra.mxu0 0.0
  %1060 = vmatprep.subr.mxu0 0.0
  %1061 = vmatpush1.msra.mxu0 0.0
  %1062 = vmatprep.subr.mxu0 0.0
  %1063 = vmatpush1.msra.mxu0 0.0
  %1064 = vmatprep.subr.mxu0 0.0
  %1065 = vmatpush1.msra.mxu0 0.0
  %1066 = vmatprep.subr.mxu0 0.0
  %1067 = vmatpush1.msra.mxu0 0.0
  %1068 = vmatprep.subr.mxu0 0.0
  %1069 = vmatpush1.msra.mxu0 0.0
  %1070 = vmatprep.subr.mxu0 0.0
  %1071 = vmatpush1.msra.mxu0 0.0
  %1072 = vmatprep.subr.mxu0 0.0
  %1073 = vmatpush1.msra.mxu0 0.0
  %1074 = vmatprep.subr.mxu0 0.0
  %1075 = vmatpush1.msra.mxu0 0.0
  %1076 = vmatprep.subr.mxu0 0.0
  %1077 = vmatpush1.msra.mxu0 0.0
  %1078 = vmatprep.subr.mxu0 0.0
  %1079 = vmatpush1.msra.mxu0 0.0
  %1080 = vmatprep.subr.mxu0 0.0
  %1081 = vmatpush1.msra.mxu0 0.0
  %1082 = vmatprep.subr.mxu0 0.0
  %1083 = vmatpush1.msra.mxu0 0.0
  %1084 = vmatprep.subr.mxu0 0.0
  %1085 = vmatpush1.msra.mxu0 0.0
  %1086 = vmatprep.subr.mxu0 0.0
  %1087 = vmatpush1.msra.mxu0 0.0
  %1088 = vmatprep.subr.mxu0 0.0
  %1089 = vmatpush1.msra.mxu0 0.0
  %1090 = vmatprep.subr.mxu0 0.0
  %1091 = vmatpush1.msra.mxu0 0.0
  %1092 = vmatprep.subr.mxu0 0.0
  %1093 = vmatpush1.msra.mxu0 0.0
  %1094 = vmatprep.subr.mxu0 0.0
  %1095 = vmatpush1.msra.mxu0 0.0
  %1096 = vmatprep.subr.mxu0 0.0
  %1097 = vmatpush1.msra.mxu0 0.0
  %1098 = vmatprep.subr.mxu0 0.0
  %1099 = vmatpush1.msra.mxu0 0.0
  %1100 = vmatprep.subr.mxu0 0.0
  %1101 = vmatpush1.msra.mxu0 0.0
  %1102 = vmatprep.subr.mxu0 0.0
  %1103 = vmatpush1.msra.mxu0 0.0
  %1104 = vmatprep.subr.mxu0 0.0
  %1105 = vmatpush1.msra.mxu0 0.0
  %1106 = vmatprep.subr.mxu0 0.0
  %1107 = vmatpush1.msra.mxu0 0.0
  %1108 = vmatprep.subr.mxu0 0.0
  %1109 = vmatpush1.msra.mxu0 0.0
  %1110 = vmatprep.subr.mxu0 0.0
  %1111 = vmatpush1.msra.mxu0 0.0
  %1112 = vmatprep.subr.mxu0 0.0
  %1113 = vmatpush1.msra.mxu0 0.0
  %1114 = vmatprep.subr.mxu0 0.0
  %1115 = vmatpush1.msra.mxu0 0.0
  %1116 = vmatprep.mubr.f32.mxu0 0.0
  %1117 = vmatmul.mubr.f32.gmra.mrb[0].mxu0 %v1047
  %v1118 = vpop.f32.mrb[0].mxu0
  %v1119 = vadd.f32 0.0, %v1118
  %v1120 = vpop.f32.mrb[0].mxu0
  %1121 = vmatprep.mubr.f32.mxu0 0.0
  %1122 = vmatmul.mubr.f32.gmra.mrb[0].mxu0 %v1050
  %v1123 = vpop.f32.mrb[0].mxu0
  %v1124 = vadd.f32 0.0, %v1123
  %v1125 = vpop.f32.mrb[0].mxu0
  %1126 = vdwg.mxu0
  %1127 = vset.pattern.permute.xlu0 38
  %1128 = vperm.xlu0 %1127, %v823
  %v1129 = vpop.permute.xlu0 %1128
  %1131 = vset.pattern.permute.xlu0 38
  %1132 = vperm.xlu0 %1131, %v828
  %v1133 = vpop.permute.xlu0 %1132
  %v1135 = vlaneseq
  %v1136 = vshrl.u32 %v1135, 7
  %v1137 = vsub.s32 2, %v1136
  %v1138 = vrot.slane %v855, %v1137
  %v1139 = vadd.f32 %v1129, %v1138
  %v1140 = vadd.f32 %v1133, %v1138
  %vm1141 = vcmp.gt.f32.partialorder %v1139, 0.0
  %vm1142 = vcmp.gt.f32.partialorder %v1140, 0.0
  %v1143 = vmul.f32 %v1139, 0.2
  %v1144 = vmul.f32 %v1140, 0.2
  %v1145 = vsel %vm1141, %v1139, %v1143
  %v1146 = vsel %vm1142, %v1140, %v1144
  %v1147 = vadd.f32 %v1145, %v46
  %v1148 = vadd.f32 %v1146, %v47
  %v1149 = vsel %vm196, %v1147, -inf
  %1150 = vmax.xlane.f32.xlu0 %v1149
  %v1151 = vpop.xlane.xlu0 %1150
  %v1152 = vsel %vm196, %v1148, -inf
  %1153 = vmax.xlane.f32.xlu0 %v1152
  %v1154 = vpop.xlane.xlu0 %1153
  %v1155 = vsub.f32 %v1147, %v1151
  %v1156 = vsub.f32 %v1148, %v1154
  %v1157 = vmul.f32 %v1155, 1.442695
  %v1158 = vpow.pop %v1157
  %v1159 = vmul.f32 %v1156, 1.442695
  %v1160 = vpow.pop %v1159
  %v1161 = vsel %vm196, %v1158, 0.0
  %1162 = vadd.xlane.f32.xlu0 %v1161
  %v1163 = vpop.xlane.xlu0 %1162
  %v1164 = vsel %vm196, %v1160, 0.0
  %1165 = vadd.xlane.f32.xlu0 %v1164
  %v1166 = vpop.xlane.xlu0 %1165
  %v1167 = vrcp.pop %v1163
  %v1168 = vmul.f32 %v1158, %v1167
  %v1169 = vrcp.pop %v1166
  %v1170 = vmul.f32 %v1160, %v1169
  %1171 = vrot.lane.b32.xlu0 %v823, 112
  %v1172 = vpop.permute.xlu0 %1171
  %1173 = vrot.lane.b32.xlu0 %v828, 112
  %v1174 = vpop.permute.xlu0 %1173
  %v1178 = vsel %vm196, %v1168, 0
  %v1181 = vsel %vm196, %v1170, 0
  %1183 = vmatprep.subr.mxu0 0.0
  %1184 = vmatpush1.msra.mxu0 %v1172
  %1185 = vmatprep.subr.mxu0 0.0
  %1186 = vmatpush1.msra.mxu0 %v1174
  %1187 = vmatprep.subr.mxu0 0.0
  %1188 = vmatpush1.msra.mxu0 0.0
  %1189 = vmatprep.subr.mxu0 0.0
  %1190 = vmatpush1.msra.mxu0 0.0
  %1191 = vmatprep.subr.mxu0 0.0
  %1192 = vmatpush1.msra.mxu0 0.0
  %1193 = vmatprep.subr.mxu0 0.0
  %1194 = vmatpush1.msra.mxu0 0.0
  %1195 = vmatprep.subr.mxu0 0.0
  %1196 = vmatpush1.msra.mxu0 0.0
  %1197 = vmatprep.subr.mxu0 0.0
  %1198 = vmatpush1.msra.mxu0 0.0
  %1199 = vmatprep.subr.mxu0 0.0
  %1200 = vmatpush1.msra.mxu0 0.0
  %1201 = vmatprep.subr.mxu0 0.0
  %1202 = vmatpush1.msra.mxu0 0.0
  %1203 = vmatprep.subr.mxu0 0.0
  %1204 = vmatpush1.msra.mxu0 0.0
  %1205 = vmatprep.subr.mxu0 0.0
  %1206 = vmatpush1.msra.mxu0 0.0
  %1207 = vmatprep.subr.mxu0 0.0
  %1208 = vmatpush1.msra.mxu0 0.0
  %1209 = vmatprep.subr.mxu0 0.0
  %1210 = vmatpush1.msra.mxu0 0.0
  %1211 = vmatprep.subr.mxu0 0.0
  %1212 = vmatpush1.msra.mxu0 0.0
  %1213 = vmatprep.subr.mxu0 0.0
  %1214 = vmatpush1.msra.mxu0 0.0
  %1215 = vmatprep.subr.mxu0 0.0
  %1216 = vmatpush1.msra.mxu0 0.0
  %1217 = vmatprep.subr.mxu0 0.0
  %1218 = vmatpush1.msra.mxu0 0.0
  %1219 = vmatprep.subr.mxu0 0.0
  %1220 = vmatpush1.msra.mxu0 0.0
  %1221 = vmatprep.subr.mxu0 0.0
  %1222 = vmatpush1.msra.mxu0 0.0
  %1223 = vmatprep.subr.mxu0 0.0
  %1224 = vmatpush1.msra.mxu0 0.0
  %1225 = vmatprep.subr.mxu0 0.0
  %1226 = vmatpush1.msra.mxu0 0.0
  %1227 = vmatprep.subr.mxu0 0.0
  %1228 = vmatpush1.msra.mxu0 0.0
  %1229 = vmatprep.subr.mxu0 0.0
  %1230 = vmatpush1.msra.mxu0 0.0
  %1231 = vmatprep.subr.mxu0 0.0
  %1232 = vmatpush1.msra.mxu0 0.0
  %1233 = vmatprep.subr.mxu0 0.0
  %1234 = vmatpush1.msra.mxu0 0.0
  %1235 = vmatprep.subr.mxu0 0.0
  %1236 = vmatpush1.msra.mxu0 0.0
  %1237 = vmatprep.subr.mxu0 0.0
  %1238 = vmatpush1.msra.mxu0 0.0
  %1239 = vmatprep.subr.mxu0 0.0
  %1240 = vmatpush1.msra.mxu0 0.0
  %1241 = vmatprep.subr.mxu0 0.0
  %1242 = vmatpush1.msra.mxu0 0.0
  %1243 = vmatprep.subr.mxu0 0.0
  %1244 = vmatpush1.msra.mxu0 0.0
  %1245 = vmatprep.subr.mxu0 0.0
  %1246 = vmatpush1.msra.mxu0 0.0
  %1247 = vmatprep.mubr.f32.mxu0 0.0
  %1248 = vmatmul.mubr.f32.gmra.mrb[0].mxu0 %v1178
  %v1249 = vpop.f32.mrb[0].mxu0
  %v1250 = vadd.f32 0.0, %v1249
  %v1251 = vpop.f32.mrb[0].mxu0
  %1252 = vmatprep.mubr.f32.mxu0 0.0
  %1253 = vmatmul.mubr.f32.gmra.mrb[0].mxu0 %v1181
  %v1254 = vpop.f32.mrb[0].mxu0
  %v1255 = vadd.f32 0.0, %v1254
  %v1256 = vpop.f32.mrb[0].mxu0
  %1257 = vdwg.mxu0
  %1258 = vset.pattern.permute.xlu0 39
  %1259 = vperm.xlu0 %1258, %v823
  %v1260 = vpop.permute.xlu0 %1259
  %1262 = vset.pattern.permute.xlu0 39
  %1263 = vperm.xlu0 %1262, %v828
  %v1264 = vpop.permute.xlu0 %1263
  %v1266 = vlaneseq
  %v1267 = vshrl.u32 %v1266, 7
  %v1268 = vsub.s32 3, %v1267
  %v1269 = vrot.slane %v855, %v1268
  %v1270 = vadd.f32 %v1260, %v1269
  %v1271 = vadd.f32 %v1264, %v1269
  %vm1272 = vcmp.gt.f32.partialorder %v1270, 0.0
  %vm1273 = vcmp.gt.f32.partialorder %v1271, 0.0
  %v1274 = vmul.f32 %v1270, 0.2
  %v1275 = vmul.f32 %v1271, 0.2
  %v1276 = vsel %vm1272, %v1270, %v1274
  %v1277 = vsel %vm1273, %v1271, %v1275
  %v1278 = vadd.f32 %v1276, %v46
  %v1279 = vadd.f32 %v1277, %v47
  %v1280 = vsel %vm196, %v1278, -inf
  %1281 = vmax.xlane.f32.xlu0 %v1280
  %v1282 = vpop.xlane.xlu0 %1281
  %v1283 = vsel %vm196, %v1279, -inf
  %1284 = vmax.xlane.f32.xlu0 %v1283
  %v1285 = vpop.xlane.xlu0 %1284
  %v1286 = vsub.f32 %v1278, %v1282
  %v1287 = vsub.f32 %v1279, %v1285
  %v1288 = vmul.f32 %v1286, 1.442695
  %v1289 = vpow.pop %v1288
  %v1290 = vmul.f32 %v1287, 1.442695
  %v1291 = vpow.pop %v1290
  %v1292 = vsel %vm196, %v1289, 0.0
  %1293 = vadd.xlane.f32.xlu0 %v1292
  %v1294 = vpop.xlane.xlu0 %1293
  %v1295 = vsel %vm196, %v1291, 0.0
  %1296 = vadd.xlane.f32.xlu0 %v1295
  %v1297 = vpop.xlane.xlu0 %1296
  %v1298 = vrcp.pop %v1294
  %v1299 = vmul.f32 %v1289, %v1298
  %v1300 = vrcp.pop %v1297
  %v1301 = vmul.f32 %v1291, %v1300
  %1302 = vrot.lane.b32.xlu0 %v823, 104
  %v1303 = vpop.permute.xlu0 %1302
  %1304 = vrot.lane.b32.xlu0 %v828, 104
  %v1305 = vpop.permute.xlu0 %1304
  %v1309 = vsel %vm196, %v1299, 0
  %v1312 = vsel %vm196, %v1301, 0
  %1314 = vmatprep.subr.mxu0 0.0
  %1315 = vmatpush1.msra.mxu0 %v1303
  %1316 = vmatprep.subr.mxu0 0.0
  %1317 = vmatpush1.msra.mxu0 %v1305
  %1318 = vmatprep.subr.mxu0 0.0
  %1319 = vmatpush1.msra.mxu0 0.0
  %1320 = vmatprep.subr.mxu0 0.0
  %1321 = vmatpush1.msra.mxu0 0.0
  %1322 = vmatprep.subr.mxu0 0.0
  %1323 = vmatpush1.msra.mxu0 0.0
  %1324 = vmatprep.subr.mxu0 0.0
  %1325 = vmatpush1.msra.mxu0 0.0
  %1326 = vmatprep.subr.mxu0 0.0
  %1327 = vmatpush1.msra.mxu0 0.0
  %1328 = vmatprep.subr.mxu0 0.0
  %1329 = vmatpush1.msra.mxu0 0.0
  %1330 = vmatprep.subr.mxu0 0.0
  %1331 = vmatpush1.msra.mxu0 0.0
  %1332 = vmatprep.subr.mxu0 0.0
  %1333 = vmatpush1.msra.mxu0 0.0
  %1334 = vmatprep.subr.mxu0 0.0
  %1335 = vmatpush1.msra.mxu0 0.0
  %1336 = vmatprep.subr.mxu0 0.0
  %1337 = vmatpush1.msra.mxu0 0.0
  %1338 = vmatprep.subr.mxu0 0.0
  %1339 = vmatpush1.msra.mxu0 0.0
  %1340 = vmatprep.subr.mxu0 0.0
  %1341 = vmatpush1.msra.mxu0 0.0
  %1342 = vmatprep.subr.mxu0 0.0
  %1343 = vmatpush1.msra.mxu0 0.0
  %1344 = vmatprep.subr.mxu0 0.0
  %1345 = vmatpush1.msra.mxu0 0.0
  %1346 = vmatprep.subr.mxu0 0.0
  %1347 = vmatpush1.msra.mxu0 0.0
  %1348 = vmatprep.subr.mxu0 0.0
  %1349 = vmatpush1.msra.mxu0 0.0
  %1350 = vmatprep.subr.mxu0 0.0
  %1351 = vmatpush1.msra.mxu0 0.0
  %1352 = vmatprep.subr.mxu0 0.0
  %1353 = vmatpush1.msra.mxu0 0.0
  %1354 = vmatprep.subr.mxu0 0.0
  %1355 = vmatpush1.msra.mxu0 0.0
  %1356 = vmatprep.subr.mxu0 0.0
  %1357 = vmatpush1.msra.mxu0 0.0
  %1358 = vmatprep.subr.mxu0 0.0
  %1359 = vmatpush1.msra.mxu0 0.0
  %1360 = vmatprep.subr.mxu0 0.0
  %1361 = vmatpush1.msra.mxu0 0.0
  %1362 = vmatprep.subr.mxu0 0.0
  %1363 = vmatpush1.msra.mxu0 0.0
  %1364 = vmatprep.subr.mxu0 0.0
  %1365 = vmatpush1.msra.mxu0 0.0
  %1366 = vmatprep.subr.mxu0 0.0
  %1367 = vmatpush1.msra.mxu0 0.0
  %1368 = vmatprep.subr.mxu0 0.0
  %1369 = vmatpush1.msra.mxu0 0.0
  %1370 = vmatprep.subr.mxu0 0.0
  %1371 = vmatpush1.msra.mxu0 0.0
  %1372 = vmatprep.subr.mxu0 0.0
  %1373 = vmatpush1.msra.mxu0 0.0
  %1374 = vmatprep.subr.mxu0 0.0
  %1375 = vmatpush1.msra.mxu0 0.0
  %1376 = vmatprep.subr.mxu0 0.0
  %1377 = vmatpush1.msra.mxu0 0.0
  %1378 = vmatprep.mubr.f32.mxu0 0.0
  %1379 = vmatmul.mubr.f32.gmra.mrb[0].mxu0 %v1309
  %v1380 = vpop.f32.mrb[0].mxu0
  %v1381 = vadd.f32 0.0, %v1380
  %v1382 = vpop.f32.mrb[0].mxu0
  %1383 = vmatprep.mubr.f32.mxu0 0.0
  %1384 = vmatmul.mubr.f32.gmra.mrb[0].mxu0 %v1312
  %v1385 = vpop.f32.mrb[0].mxu0
  %v1386 = vadd.f32 0.0, %v1385
  %v1387 = vpop.f32.mrb[0].mxu0
  %1388 = vdwg.mxu0
  %1391 = vrot.lane.b32.xlu0 %v1119, 8
  %v1392 = vpop.permute.xlu0 %1391
  %1393 = vrot.lane.b32.xlu0 %v1124, 8
  %v1394 = vpop.permute.xlu0 %1393
  %1399 = vrot.lane.b32.xlu0 %v1250, 16
  %v1400 = vpop.permute.xlu0 %1399
  %1401 = vrot.lane.b32.xlu0 %v1255, 16
  %v1402 = vpop.permute.xlu0 %1401
  %1407 = vrot.lane.b32.xlu0 %v1381, 24
  %v1408 = vpop.permute.xlu0 %1407
  %1409 = vrot.lane.b32.xlu0 %v1386, 24
  %v1410 = vpop.permute.xlu0 %1409
  %v1413 = vsel %vm717, %v988, %v1392
  %v1414 = vsel %vm717, %v993, %v1394
  %v1415 = vsel %vm196, %v1413, %v1400
  %v1416 = vsel %vm196, %v1414, %v1402
  %v1417 = vsel %vm722, %v1415, %v1408
  %v1418 = vsel %vm722, %v1416, %v1410
  %v1419 = vld [vmem:[%s6] sm:$0x1]
  %v1421 = vlaneseq
  %v1422 = vshrl.u32 %v1421, 7
  %v1423 = vsub.s32 0, %v1422
  %v1424 = vrot.slane %v1419, %v1423
  %v1426 = vadd.f32 %v1417, %v1424
  %v1427 = vadd.f32 %v1418, %v1424
  %vm1428 = vcmp.gt.f32.partialorder %v1426, 0.0
  %vm1429 = vcmp.gt.f32.partialorder %v1427, 0.0
  %v1430 = vmin.f32 %v1426, 0.0
  %v1431 = vmin.f32 %v1427, 0.0
  %v1432 = vmul.f32 %v1430, 1.442695
  %v1433 = vpow.pop %v1432
  %v1434 = vmul.f32 %v1431, 1.442695
  %v1435 = vpow.pop %v1434
  %v1436 = vsub.f32 %v1433, 1.0
  %v1437 = vsub.f32 %v1435, 1.0
  %v1438 = vsel %vm1428, %v1426, %v1436
  %v1439 = vsel %vm1429, %v1427, %v1437
  %v1440 = vld [vmem:[%s7] sm:$0xff]
  %v1441 = vld [vmem:[%s7 + $0x8] sm:$0xff]
  %v1442 = vld [vmem:[%s7 + $0x10] sm:$0xff]
  %v1443 = vld [vmem:[%s7 + $0x18] sm:$0xff]
  %v1445 = vsel %vm52, %v1438, 0
  %v1448 = vsel %vm52, %v1439, 0
  %1450 = vmatprep.subr.mxu0 0.0
  %1451 = vmatpush1.msra.mxu0 %v1440
  %1452 = vmatprep.subr.mxu0 0.0
  %1453 = vmatpush1.msra.mxu0 %v1441
  %1454 = vmatprep.subr.mxu0 0.0
  %1455 = vmatpush1.msra.mxu0 %v1442
  %1456 = vmatprep.subr.mxu0 0.0
  %1457 = vmatpush1.msra.mxu0 %v1443
  %1458 = vmatprep.subr.mxu0 0.0
  %1459 = vmatpush1.msra.mxu0 0.0
  %1460 = vmatprep.subr.mxu0 0.0
  %1461 = vmatpush1.msra.mxu0 0.0
  %1462 = vmatprep.subr.mxu0 0.0
  %1463 = vmatpush1.msra.mxu0 0.0
  %1464 = vmatprep.subr.mxu0 0.0
  %1465 = vmatpush1.msra.mxu0 0.0
  %1466 = vmatprep.subr.mxu0 0.0
  %1467 = vmatpush1.msra.mxu0 0.0
  %1468 = vmatprep.subr.mxu0 0.0
  %1469 = vmatpush1.msra.mxu0 0.0
  %1470 = vmatprep.subr.mxu0 0.0
  %1471 = vmatpush1.msra.mxu0 0.0
  %1472 = vmatprep.subr.mxu0 0.0
  %1473 = vmatpush1.msra.mxu0 0.0
  %1474 = vmatprep.subr.mxu0 0.0
  %1475 = vmatpush1.msra.mxu0 0.0
  %1476 = vmatprep.subr.mxu0 0.0
  %1477 = vmatpush1.msra.mxu0 0.0
  %1478 = vmatprep.subr.mxu0 0.0
  %1479 = vmatpush1.msra.mxu0 0.0
  %1480 = vmatprep.subr.mxu0 0.0
  %1481 = vmatpush1.msra.mxu0 0.0
  %1482 = vmatprep.subr.mxu0 0.0
  %1483 = vmatpush1.msra.mxu0 0.0
  %1484 = vmatprep.subr.mxu0 0.0
  %1485 = vmatpush1.msra.mxu0 0.0
  %1486 = vmatprep.subr.mxu0 0.0
  %1487 = vmatpush1.msra.mxu0 0.0
  %1488 = vmatprep.subr.mxu0 0.0
  %1489 = vmatpush1.msra.mxu0 0.0
  %1490 = vmatprep.subr.mxu0 0.0
  %1491 = vmatpush1.msra.mxu0 0.0
  %1492 = vmatprep.subr.mxu0 0.0
  %1493 = vmatpush1.msra.mxu0 0.0
  %1494 = vmatprep.subr.mxu0 0.0
  %1495 = vmatpush1.msra.mxu0 0.0
  %1496 = vmatprep.subr.mxu0 0.0
  %1497 = vmatpush1.msra.mxu0 0.0
  %1498 = vmatprep.subr.mxu0 0.0
  %1499 = vmatpush1.msra.mxu0 0.0
  %1500 = vmatprep.subr.mxu0 0.0
  %1501 = vmatpush1.msra.mxu0 0.0
  %1502 = vmatprep.subr.mxu0 0.0
  %1503 = vmatpush1.msra.mxu0 0.0
  %1504 = vmatprep.subr.mxu0 0.0
  %1505 = vmatpush1.msra.mxu0 0.0
  %1506 = vmatprep.subr.mxu0 0.0
  %1507 = vmatpush1.msra.mxu0 0.0
  %1508 = vmatprep.subr.mxu0 0.0
  %1509 = vmatpush1.msra.mxu0 0.0
  %1510 = vmatprep.subr.mxu0 0.0
  %1511 = vmatpush1.msra.mxu0 0.0
  %1512 = vmatprep.subr.mxu0 0.0
  %1513 = vmatpush1.msra.mxu0 0.0
  %1514 = vmatprep.mubr.f32.mxu0 0.0
  %1515 = vmatmul.mubr.f32.gmra.mrb[0].mxu0 %v1445
  %v1516 = vpop.f32.mrb[0].mxu0
  %v1517 = vadd.f32 0.0, %v1516
  %v1518 = vpop.f32.mrb[0].mxu0
  %1519 = vmatprep.mubr.f32.mxu0 0.0
  %1520 = vmatmul.mubr.f32.gmra.mrb[0].mxu0 %v1448
  %v1521 = vpop.f32.mrb[0].mxu0
  %v1522 = vadd.f32 0.0, %v1521
  %v1523 = vpop.f32.mrb[0].mxu0
  %1524 = vdwg.mxu0
  %1527 = vrot.lane.b32.xlu0 %v1517, 96
  %v1528 = vpop.permute.xlu0 %1527
  %1529 = vrot.lane.b32.xlu0 %v1522, 96
  %v1530 = vpop.permute.xlu0 %1529
  %1533 = vxpose.xlu0.b32.start [1/16] %v1528, 128
  %1534 = vxpose.xlu0.b32.cont [2/16] %v1530, 128
  %1535 = vxpose.xlu0.b32.cont [3/16] 0.0, 128
  %1536 = vxpose.xlu0.b32.cont [4/16] 0.0, 128
  %1537 = vxpose.xlu0.b32.cont [5/16] 0.0, 128
  %1538 = vxpose.xlu0.b32.cont [6/16] 0.0, 128
  %1539 = vxpose.xlu0.b32.cont [7/16] 0.0, 128
  %1540 = vxpose.xlu0.b32.cont [8/16] 0.0, 128
  %1541 = vxpose.xlu0.b32.cont [9/16] 0.0, 128
  %1542 = vxpose.xlu0.b32.cont [10/16] 0.0, 128
  %1543 = vxpose.xlu0.b32.cont [11/16] 0.0, 128
  %1544 = vxpose.xlu0.b32.cont [12/16] 0.0, 128
  %1545 = vxpose.xlu0.b32.cont [13/16] 0.0, 128
  %1546 = vxpose.xlu0.b32.cont [14/16] 0.0, 128
  %1547 = vxpose.xlu0.b32.cont [15/16] 0.0, 128
  %1548 = vxpose.xlu0.b32.end [16/16] 0.0, 128
  %v1549 = vpop.trf.xlu0
  %v1550 = vpop.trf.xlu0
  %v1551 = vpop.trf.xlu0
  %v1552 = vpop.trf.xlu0
  %v1553 = vpop.trf.xlu0
  %v1554 = vpop.trf.xlu0
  %v1555 = vpop.trf.xlu0
  %v1556 = vpop.trf.xlu0
  %v1557 = vpop.trf.xlu0
  %v1558 = vpop.trf.xlu0
  %v1559 = vpop.trf.xlu0
  %v1560 = vpop.trf.xlu0
  %v1561 = vpop.trf.xlu0
  %v1562 = vpop.trf.xlu0
  %v1563 = vpop.trf.xlu0
  %v1564 = vpop.trf.xlu0
  %1565 = vset.pattern.permute.xlu0 33
  %1566 = vperm.xlu0 %1565, %v1517
  %v1567 = vpop.permute.xlu0 %1566
  %1569 = vset.pattern.permute.xlu0 33
  %1570 = vperm.xlu0 %1569, %v1522
  %v1571 = vpop.permute.xlu0 %1570
  %v1573 = vlaneseq
  %v1574 = vshrl.u32 %v1573, 7
  %v1575 = vsub.s32 0, %v1574
  %v1576 = vrot.slane %v1549, %v1575
  %v1577 = vadd.f32 %v1567, %v1576
  %v1578 = vadd.f32 %v1571, %v1576
  %vm1579 = vcmp.gt.f32.partialorder %v1577, 0.0
  %vm1580 = vcmp.gt.f32.partialorder %v1578, 0.0
  %v1581 = vmul.f32 %v1577, 0.2
  %v1582 = vmul.f32 %v1578, 0.2
  %v1583 = vsel %vm1579, %v1577, %v1581
  %v1584 = vsel %vm1580, %v1578, %v1582
  %v1585 = vadd.f32 %v1583, %v46
  %v1586 = vadd.f32 %v1584, %v47
  %v1587 = vsel %vm196, %v1585, -inf
  %1588 = vmax.xlane.f32.xlu0 %v1587
  %v1589 = vpop.xlane.xlu0 %1588
  %v1590 = vsel %vm196, %v1586, -inf
  %1591 = vmax.xlane.f32.xlu0 %v1590
  %v1592 = vpop.xlane.xlu0 %1591
  %v1593 = vsub.f32 %v1585, %v1589
  %v1594 = vsub.f32 %v1586, %v1592
  %v1595 = vmul.f32 %v1593, 1.442695
  %v1596 = vpow.pop %v1595
  %v1597 = vmul.f32 %v1594, 1.442695
  %v1598 = vpow.pop %v1597
  %v1599 = vsel %vm196, %v1596, 0.0
  %1600 = vadd.xlane.f32.xlu0 %v1599
  %v1601 = vpop.xlane.xlu0 %1600
  %v1602 = vsel %vm196, %v1598, 0.0
  %1603 = vadd.xlane.f32.xlu0 %v1602
  %v1604 = vpop.xlane.xlu0 %1603
  %v1605 = vrcp.pop %v1601
  %v1606 = vmul.f32 %v1596, %v1605
  %v1607 = vrcp.pop %v1604
  %v1608 = vmul.f32 %v1598, %v1607
  %v1609 = vld [vmem:[%s8] sm:$0x1]
  %v1611 = vlaneseq
  %v1612 = vshrl.u32 %v1611, 7
  %v1613 = vsub.s32 0, %v1612
  %v1614 = vrot.slane %v1609, %v1613
  %v1617 = vsel %vm196, %v1606, 0
  %v1620 = vsel %vm196, %v1608, 0
  %1622 = vmatprep.subr.mxu0 0.0
  %1623 = vmatpush1.msra.mxu0 %v1517
  %1624 = vmatprep.subr.mxu0 0.0
  %1625 = vmatpush1.msra.mxu0 %v1522
  %1626 = vmatprep.subr.mxu0 0.0
  %1627 = vmatpush1.msra.mxu0 0.0
  %1628 = vmatprep.subr.mxu0 0.0
  %1629 = vmatpush1.msra.mxu0 0.0
  %1630 = vmatprep.subr.mxu0 0.0
  %1631 = vmatpush1.msra.mxu0 0.0
  %1632 = vmatprep.subr.mxu0 0.0
  %1633 = vmatpush1.msra.mxu0 0.0
  %1634 = vmatprep.subr.mxu0 0.0
  %1635 = vmatpush1.msra.mxu0 0.0
  %1636 = vmatprep.subr.mxu0 0.0
  %1637 = vmatpush1.msra.mxu0 0.0
  %1638 = vmatprep.subr.mxu0 0.0
  %1639 = vmatpush1.msra.mxu0 0.0
  %1640 = vmatprep.subr.mxu0 0.0
  %1641 = vmatpush1.msra.mxu0 0.0
  %1642 = vmatprep.subr.mxu0 0.0
  %1643 = vmatpush1.msra.mxu0 0.0
  %1644 = vmatprep.subr.mxu0 0.0
  %1645 = vmatpush1.msra.mxu0 0.0
  %1646 = vmatprep.subr.mxu0 0.0
  %1647 = vmatpush1.msra.mxu0 0.0
  %1648 = vmatprep.subr.mxu0 0.0
  %1649 = vmatpush1.msra.mxu0 0.0
  %1650 = vmatprep.subr.mxu0 0.0
  %1651 = vmatpush1.msra.mxu0 0.0
  %1652 = vmatprep.subr.mxu0 0.0
  %1653 = vmatpush1.msra.mxu0 0.0
  %1654 = vmatprep.subr.mxu0 0.0
  %1655 = vmatpush1.msra.mxu0 0.0
  %1656 = vmatprep.subr.mxu0 0.0
  %1657 = vmatpush1.msra.mxu0 0.0
  %1658 = vmatprep.subr.mxu0 0.0
  %1659 = vmatpush1.msra.mxu0 0.0
  %1660 = vmatprep.subr.mxu0 0.0
  %1661 = vmatpush1.msra.mxu0 0.0
  %1662 = vmatprep.subr.mxu0 0.0
  %1663 = vmatpush1.msra.mxu0 0.0
  %1664 = vmatprep.subr.mxu0 0.0
  %1665 = vmatpush1.msra.mxu0 0.0
  %1666 = vmatprep.subr.mxu0 0.0
  %1667 = vmatpush1.msra.mxu0 0.0
  %1668 = vmatprep.subr.mxu0 0.0
  %1669 = vmatpush1.msra.mxu0 0.0
  %1670 = vmatprep.subr.mxu0 0.0
  %1671 = vmatpush1.msra.mxu0 0.0
  %1672 = vmatprep.subr.mxu0 0.0
  %1673 = vmatpush1.msra.mxu0 0.0
  %1674 = vmatprep.subr.mxu0 0.0
  %1675 = vmatpush1.msra.mxu0 0.0
  %1676 = vmatprep.subr.mxu0 0.0
  %1677 = vmatpush1.msra.mxu0 0.0
  %1678 = vmatprep.subr.mxu0 0.0
  %1679 = vmatpush1.msra.mxu0 0.0
  %1680 = vmatprep.subr.mxu0 0.0
  %1681 = vmatpush1.msra.mxu0 0.0
  %1682 = vmatprep.subr.mxu0 0.0
  %1683 = vmatpush1.msra.mxu0 0.0
  %1684 = vmatprep.subr.mxu0 0.0
  %1685 = vmatpush1.msra.mxu0 0.0
  %1686 = vmatprep.mubr.f32.mxu0 0.0
  %1687 = vmatmul.mubr.f32.gmra.mrb[0].mxu0 %v1617
  %v1688 = vpop.f32.mrb[0].mxu0
  %v1689 = vadd.f32 %v1614, %v1688
  %v1690 = vpop.f32.mrb[0].mxu0
  %1691 = vmatprep.mubr.f32.mxu0 0.0
  %1692 = vmatmul.mubr.f32.gmra.mrb[0].mxu0 %v1620
  %v1693 = vpop.f32.mrb[0].mxu0
  %v1694 = vadd.f32 %v1614, %v1693
  %v1695 = vpop.f32.mrb[0].mxu0
  %1696 = vdwg.mxu0
  %v1697 = vld [vmem:[%s2] sm:$0xff]
  %v1698 = vld [vmem:[%s2 + $0x8] sm:$0xff]
  %v1699 = vld [vmem:[%s2 + $0x10] sm:$0xff]
  %v1700 = vld [vmem:[%s2 + $0x18] sm:$0xff]
  %1702 = vset.pattern.permute.xlu0 0
  %1703 = vperm.xlu0 %1702, %v1697
  %v1704 = vpop.permute.xlu0 %1703
  %1707 = vset.pattern.permute.xlu0 0
  %1708 = vperm.xlu0 %1707, %v1698
  %v1709 = vpop.permute.xlu0 %1708
  %1712 = vset.pattern.permute.xlu0 0
  %1713 = vperm.xlu0 %1712, %v1699
  %v1714 = vpop.permute.xlu0 %1713
  %1717 = vset.pattern.permute.xlu0 0
  %1718 = vperm.xlu0 %1717, %v1700
  %v1719 = vpop.permute.xlu0 %1718
  %v1721 = vadd.f32 %v1689, %v1704
  %v1722 = vadd.f32 %v1694, %v1709
  %v1723 = vadd.f32 %v1689, %v1714
  %v1724 = vadd.f32 %v1694, %v1719
  %v1725 = vsel %vm52, %v1721, -inf
  %v1726 = vsel %vm52, %v1722, -inf
  %v1727 = vmax.f32 %v1725, %v1726
  %v1728 = vrot.slane %v1727, 4
  %v1729 = vmax.f32 %v1727, %v1728
  %v1730 = vrot.slane %v1729, 2
  %v1731 = vmax.f32 %v1729, %v1730
  %v1732 = vrot.slane %v1731, 1
  %v1733 = vmax.f32 %v1731, %v1732
  %v1734 = vsel %vm52, %v1723, -inf
  %v1735 = vsel %vm52, %v1724, -inf
  %v1736 = vmax.f32 %v1734, %v1735
  %v1737 = vrot.slane %v1736, 4
  %v1738 = vmax.f32 %v1736, %v1737
  %v1739 = vrot.slane %v1738, 2
  %v1740 = vmax.f32 %v1738, %v1739
  %v1741 = vrot.slane %v1740, 1
  %v1742 = vmax.f32 %v1740, %v1741
  %v1743 = vld [vmem:[%s9] sm:$0xff]
  %v1744 = vld [vmem:[%s9 + $0x8] sm:$0xff]
  %v1745 = vld [vmem:[%s9 + $0x10] sm:$0xff]
  %v1746 = vld [vmem:[%s9 + $0x18] sm:$0xff]
  %v1747 = vld [vmem:[%s10] sm:$0x1]
  %v1749 = vlaneseq
  %v1750 = vshrl.u32 %v1749, 7
  %v1751 = vsub.s32 0, %v1750
  %v1752 = vrot.slane %v1747, %v1751
  %vm1756 = vcmask 1041409
  %v1757 = vsel %vm1756, %v1742, %v1733
  %v1758 = vsel %vm52, %v1757, 0
  %1760 = vmatprep.subr.mxu0 0.0
  %1761 = vmatpush1.msra.mxu0 %v1743
  %1762 = vmatprep.subr.mxu0 0.0
  %1763 = vmatpush1.msra.mxu0 %v1744
  %1764 = vmatprep.subr.mxu0 0.0
  %1765 = vmatpush1.msra.mxu0 %v1745
  %1766 = vmatprep.subr.mxu0 0.0
  %1767 = vmatpush1.msra.mxu0 %v1746
  %1768 = vmatprep.subr.mxu0 0.0
  %1769 = vmatpush1.msra.mxu0 0.0
  %1770 = vmatprep.subr.mxu0 0.0
  %1771 = vmatpush1.msra.mxu0 0.0
  %1772 = vmatprep.subr.mxu0 0.0
  %1773 = vmatpush1.msra.mxu0 0.0
  %1774 = vmatprep.subr.mxu0 0.0
  %1775 = vmatpush1.msra.mxu0 0.0
  %1776 = vmatprep.subr.mxu0 0.0
  %1777 = vmatpush1.msra.mxu0 0.0
  %1778 = vmatprep.subr.mxu0 0.0
  %1779 = vmatpush1.msra.mxu0 0.0
  %1780 = vmatprep.subr.mxu0 0.0
  %1781 = vmatpush1.msra.mxu0 0.0
  %1782 = vmatprep.subr.mxu0 0.0
  %1783 = vmatpush1.msra.mxu0 0.0
  %1784 = vmatprep.subr.mxu0 0.0
  %1785 = vmatpush1.msra.mxu0 0.0
  %1786 = vmatprep.subr.mxu0 0.0
  %1787 = vmatpush1.msra.mxu0 0.0
  %1788 = vmatprep.subr.mxu0 0.0
  %1789 = vmatpush1.msra.mxu0 0.0
  %1790 = vmatprep.subr.mxu0 0.0
  %1791 = vmatpush1.msra.mxu0 0.0
  %1792 = vmatprep.subr.mxu0 0.0
  %1793 = vmatpush1.msra.mxu0 0.0
  %1794 = vmatprep.subr.mxu0 0.0
  %1795 = vmatpush1.msra.mxu0 0.0
  %1796 = vmatprep.subr.mxu0 0.0
  %1797 = vmatpush1.msra.mxu0 0.0
  %1798 = vmatprep.subr.mxu0 0.0
  %1799 = vmatpush1.msra.mxu0 0.0
  %1800 = vmatprep.subr.mxu0 0.0
  %1801 = vmatpush1.msra.mxu0 0.0
  %1802 = vmatprep.subr.mxu0 0.0
  %1803 = vmatpush1.msra.mxu0 0.0
  %1804 = vmatprep.subr.mxu0 0.0
  %1805 = vmatpush1.msra.mxu0 0.0
  %1806 = vmatprep.subr.mxu0 0.0
  %1807 = vmatpush1.msra.mxu0 0.0
  %1808 = vmatprep.subr.mxu0 0.0
  %1809 = vmatpush1.msra.mxu0 0.0
  %1810 = vmatprep.subr.mxu0 0.0
  %1811 = vmatpush1.msra.mxu0 0.0
  %1812 = vmatprep.subr.mxu0 0.0
  %1813 = vmatpush1.msra.mxu0 0.0
  %1814 = vmatprep.subr.mxu0 0.0
  %1815 = vmatpush1.msra.mxu0 0.0
  %1816 = vmatprep.subr.mxu0 0.0
  %1817 = vmatpush1.msra.mxu0 0.0
  %1818 = vmatprep.subr.mxu0 0.0
  %1819 = vmatpush1.msra.mxu0 0.0
  %1820 = vmatprep.subr.mxu0 0.0
  %1821 = vmatpush1.msra.mxu0 0.0
  %1822 = vmatprep.subr.mxu0 0.0
  %1823 = vmatpush1.msra.mxu0 0.0
  %1824 = vmatprep.mubr.f32.mxu0 0.0
  %1825 = vmatmul.mubr.f32.gmra.mrb[0].mxu0 %v1758
  %v1826 = vpop.f32.mrb[0].mxu0
  %v1827 = vadd.f32 %v1752, %v1826
  %v1828 = vpop.f32.mrb[0].mxu0
  %1829 = vdwg.mxu0
  %vm1830 = vcmask 25600
  %v1831 = vsel %vm1830, %v1827, -inf
  %1832 = vmax.xlane.f32.xlu0 %v1831
  %v1833 = vpop.xlane.xlu0 %1832
  %v1834 = vsub.f32 %v1827, %v1833
  %v1835 = vmul.f32 %v1834, 1.442695
  %v1836 = vpow.pop %v1835
  %v1837 = vsel %vm1830, %v1836, 0.0
  %1838 = vadd.xlane.f32.xlu0 %v1837
  %v1839 = vpop.xlane.xlu0 %1838
  %v1840 = vrcp.pop %v1839
  %v1841 = vmul.f32 %v1836, %v1840
  %v1842 = vld [vmem:[%s11] sm:$0xf]
  %vm1843 = vcmask 31744
  %v1845 = vsel %vm1843, %v1841, 0
  %vm1847 = vcmask 1043456
  %v1849 = vsel %vm1847, %v1842, 0
  %1851 = vmatprep.subr.mxu0 0.0
  %1852 = vmatpush1.msra.mxu0 %v1849
  %1853 = vmatprep.subr.mxu0 0.0
  %1854 = vmatpush1.msra.mxu0 0.0
  %1855 = vmatprep.subr.mxu0 0.0
  %1856 = vmatpush1.msra.mxu0 0.0
  %1857 = vmatprep.subr.mxu0 0.0
  %1858 = vmatpush1.msra.mxu0 0.0
  %1859 = vmatprep.subr.mxu0 0.0
  %1860 = vmatpush1.msra.mxu0 0.0
  %1861 = vmatprep.subr.mxu0 0.0
  %1862 = vmatpush1.msra.mxu0 0.0
  %1863 = vmatprep.subr.mxu0 0.0
  %1864 = vmatpush1.msra.mxu0 0.0
  %1865 = vmatprep.subr.mxu0 0.0
  %1866 = vmatpush1.msra.mxu0 0.0
  %1867 = vmatprep.subr.mxu0 0.0
  %1868 = vmatpush1.msra.mxu0 0.0
  %1869 = vmatprep.subr.mxu0 0.0
  %1870 = vmatpush1.msra.mxu0 0.0
  %1871 = vmatprep.subr.mxu0 0.0
  %1872 = vmatpush1.msra.mxu0 0.0
  %1873 = vmatprep.subr.mxu0 0.0
  %1874 = vmatpush1.msra.mxu0 0.0
  %1875 = vmatprep.subr.mxu0 0.0
  %1876 = vmatpush1.msra.mxu0 0.0
  %1877 = vmatprep.subr.mxu0 0.0
  %1878 = vmatpush1.msra.mxu0 0.0
  %1879 = vmatprep.subr.mxu0 0.0
  %1880 = vmatpush1.msra.mxu0 0.0
  %1881 = vmatprep.subr.mxu0 0.0
  %1882 = vmatpush1.msra.mxu0 0.0
  %1883 = vmatprep.subr.mxu0 0.0
  %1884 = vmatpush1.msra.mxu0 0.0
  %1885 = vmatprep.subr.mxu0 0.0
  %1886 = vmatpush1.msra.mxu0 0.0
  %1887 = vmatprep.subr.mxu0 0.0
  %1888 = vmatpush1.msra.mxu0 0.0
  %1889 = vmatprep.subr.mxu0 0.0
  %1890 = vmatpush1.msra.mxu0 0.0
  %1891 = vmatprep.subr.mxu0 0.0
  %1892 = vmatpush1.msra.mxu0 0.0
  %1893 = vmatprep.subr.mxu0 0.0
  %1894 = vmatpush1.msra.mxu0 0.0
  %1895 = vmatprep.subr.mxu0 0.0
  %1896 = vmatpush1.msra.mxu0 0.0
  %1897 = vmatprep.subr.mxu0 0.0
  %1898 = vmatpush1.msra.mxu0 0.0
  %1899 = vmatprep.subr.mxu0 0.0
  %1900 = vmatpush1.msra.mxu0 0.0
  %1901 = vmatprep.subr.mxu0 0.0
  %1902 = vmatpush1.msra.mxu0 0.0
  %1903 = vmatprep.subr.mxu0 0.0
  %1904 = vmatpush1.msra.mxu0 0.0
  %1905 = vmatprep.subr.mxu0 0.0
  %1906 = vmatpush1.msra.mxu0 0.0
  %1907 = vmatprep.subr.mxu0 0.0
  %1908 = vmatpush1.msra.mxu0 0.0
  %1909 = vmatprep.subr.mxu0 0.0
  %1910 = vmatpush1.msra.mxu0 0.0
  %1911 = vmatprep.subr.mxu0 0.0
  %1912 = vmatpush1.msra.mxu0 0.0
  %1913 = vmatprep.subr.mxu0 0.0
  %1914 = vmatpush1.msra.mxu0 0.0
  %1915 = vmatprep.mubr.f32.mxu0 0.0
  %1916 = vmatmul.mubr.f32.gmra.mrb[0].mxu0 %v1845
  %v1917 = vpop.f32.mrb[0].mxu0
  %v1918 = vadd.f32 0.0, %v1917
  %v1919 = vpop.f32.mrb[0].mxu0
  %1920 = vdwg.mxu0
  %1922 = vrot.lane.b32.xlu0 %v1918, 4
  %v1923 = vpop.permute.xlu0 %1922
  %v1925 = vadd.f32 %v1827, %v1923
  %vm1926 = vcmask 74784
  %v1927 = vsel %vm1926, %v1925, -inf
  %1928 = vmax.xlane.f32.xlu0 %v1927
  %v1929 = vpop.xlane.xlu0 %1928
  %v1930 = vsub.f32 %v1925, %v1929
  %v1931 = vmul.f32 %v1930, 1.442695
  %v1932 = vpow.pop %v1931
  %1934 = vrot.lane.b32.xlu0 %v1932, 124
  %v1935 = vpop.permute.xlu0 %1934
  %vm1937 = vcmask 41984
  %v1938 = vsel %vm1937, %v1935, 0.0
  %1939 = vadd.xlane.f32.xlu0 %v1938
  %v1940 = vpop.xlane.xlu0 %1939
  %v1941 = vrcp.pop %v1940
  %v1942 = vmul.f32 %v1932, %v1941
  %v1943 = vld [vmem:[%s12] sm:$0x3f]
  %1945 = vrot.lane.b32.xlu0 %v1942, 124
  %v1946 = vpop.permute.xlu0 %1945
  %vm1947 = vcmask 48128
  %v1948 = vsel %vm1947, %v1946, 0
  %vm1950 = vcmask 1045504
  %v1952 = vsel %vm1950, %v1943, 0
  %1954 = vmatprep.subr.mxu0 0.0
  %1955 = vmatpush1.msra.mxu0 %v1952
  %1956 = vmatprep.subr.mxu0 0.0
  %1957 = vmatpush1.msra.mxu0 0.0
  %1958 = vmatprep.subr.mxu0 0.0
  %1959 = vmatpush1.msra.mxu0 0.0
  %1960 = vmatprep.subr.mxu0 0.0
  %1961 = vmatpush1.msra.mxu0 0.0
  %1962 = vmatprep.subr.mxu0 0.0
  %1963 = vmatpush1.msra.mxu0 0.0
  %1964 = vmatprep.subr.mxu0 0.0
  %1965 = vmatpush1.msra.mxu0 0.0
  %1966 = vmatprep.subr.mxu0 0.0
  %1967 = vmatpush1.msra.mxu0 0.0
  %1968 = vmatprep.subr.mxu0 0.0
  %1969 = vmatpush1.msra.mxu0 0.0
  %1970 = vmatprep.subr.mxu0 0.0
  %1971 = vmatpush1.msra.mxu0 0.0
  %1972 = vmatprep.subr.mxu0 0.0
  %1973 = vmatpush1.msra.mxu0 0.0
  %1974 = vmatprep.subr.mxu0 0.0
  %1975 = vmatpush1.msra.mxu0 0.0
  %1976 = vmatprep.subr.mxu0 0.0
  %1977 = vmatpush1.msra.mxu0 0.0
  %1978 = vmatprep.subr.mxu0 0.0
  %1979 = vmatpush1.msra.mxu0 0.0
  %1980 = vmatprep.subr.mxu0 0.0
  %1981 = vmatpush1.msra.mxu0 0.0
  %1982 = vmatprep.subr.mxu0 0.0
  %1983 = vmatpush1.msra.mxu0 0.0
  %1984 = vmatprep.subr.mxu0 0.0
  %1985 = vmatpush1.msra.mxu0 0.0
  %1986 = vmatprep.subr.mxu0 0.0
  %1987 = vmatpush1.msra.mxu0 0.0
  %1988 = vmatprep.subr.mxu0 0.0
  %1989 = vmatpush1.msra.mxu0 0.0
  %1990 = vmatprep.subr.mxu0 0.0
  %1991 = vmatpush1.msra.mxu0 0.0
  %1992 = vmatprep.subr.mxu0 0.0
  %1993 = vmatpush1.msra.mxu0 0.0
  %1994 = vmatprep.subr.mxu0 0.0
  %1995 = vmatpush1.msra.mxu0 0.0
  %1996 = vmatprep.subr.mxu0 0.0
  %1997 = vmatpush1.msra.mxu0 0.0
  %1998 = vmatprep.subr.mxu0 0.0
  %1999 = vmatpush1.msra.mxu0 0.0
  %2000 = vmatprep.subr.mxu0 0.0
  %2001 = vmatpush1.msra.mxu0 0.0
  %2002 = vmatprep.subr.mxu0 0.0
  %2003 = vmatpush1.msra.mxu0 0.0
  %2004 = vmatprep.subr.mxu0 0.0
  %2005 = vmatpush1.msra.mxu0 0.0
  %2006 = vmatprep.subr.mxu0 0.0
  %2007 = vmatpush1.msra.mxu0 0.0
  %2008 = vmatprep.subr.mxu0 0.0
  %2009 = vmatpush1.msra.mxu0 0.0
  %2010 = vmatprep.subr.mxu0 0.0
  %2011 = vmatpush1.msra.mxu0 0.0
  %2012 = vmatprep.subr.mxu0 0.0
  %2013 = vmatpush1.msra.mxu0 0.0
  %2014 = vmatprep.subr.mxu0 0.0
  %2015 = vmatpush1.msra.mxu0 0.0
  %2016 = vmatprep.subr.mxu0 0.0
  %2017 = vmatpush1.msra.mxu0 0.0
  %2018 = vmatprep.mubr.f32.mxu0 0.0
  %2019 = vmatmul.mubr.f32.gmra.mrb[0].mxu0 %v1948
  %v2020 = vpop.f32.mrb[0].mxu0
  %v2021 = vadd.f32 0.0, %v2020
  %v2022 = vpop.f32.mrb[0].mxu0
  %2023 = vdwg.mxu0
  %2025 = vrot.lane.b32.xlu0 %v2021, 10
  %v2026 = vpop.permute.xlu0 %2025
  %v2028 = vadd.f32 %v1827, %v2026
  %v2029 = vsel %vm1843, %v1827, %v1925
  %vm2030 = vcmask 80896
  %v2031 = vsel %vm2030, %v2029, %v2028
  %vm2032 = vcmask 140288
  %2033 = vst.msk [vmem:[%s13] sm:$0x3] %vm2032, %v2031
  // Predicated region
  $region54: #{hierarchical_gat_forward.1} parent=0 // pred_check
    _
  $region55: #{hierarchical_gat_forward.1} parent=0 // pred_check_branch
    %2035 = sbr.rel (0) target = $region57
  $region56: #{hierarchical_gat_forward.1} parent=0 // pred_region
    _
  $region57: #{hierarchical_gat_forward.1} parent=0 // pred_fallthru
    _
  // Predicated region
  $region58: #{hierarchical_gat_forward.1} parent=0 // pred_check
    _
  $region59: #{hierarchical_gat_forward.1} parent=0 // pred_check_branch
    %2037 = sbr.rel (0) target = $region61
  $region60: #{hierarchical_gat_forward.1} parent=0 // pred_region
    _
  $region61: #{hierarchical_gat_forward.1} parent=0 // pred_fallthru
    _

</llo_original>
